<compile_context>
chip_gen: v7x
topology: tpu7x:2x2x1
jax: 0.10.0
libtpu: 0.0.40
codegen_flags: <defaults>
</compile_context>

<pallas_src>
import math

import jax
import jax.numpy as jnp
from jax.experimental import pallas as pl
from jax.experimental.pallas import tpu as pltpu

NUM_HEADS = 4
HEAD_DIM = 8
HIDDEN = NUM_HEADS * HEAD_DIM      # 32
SEQ = 8
BATCH = 2

# Large finite negative instead of -inf: identical results for any row with at
# least one unmasked key, but robust against all-masked rows (no NaN).
_MASK_NEG = -1e30


def _self_attention_kernel(hidden_ref, wq_ref, wk_ref, wv_ref, qb_ref, vb_ref,
                           bias_ref, out_ref):
    """One grid step == one batch element; all heads handled in batched einsums."""
    _, S, Hn = hidden_ref.shape
    H, _, D = wq_ref.shape

    h = hidden_ref[0]                                             # (S, HIDDEN)
    # Broadcast the activations once so every matmul below is the
    # well-supported batched form (batch dim = head, leading).
    hb = jnp.broadcast_to(h[None, :, :], (H, S, Hn))              # (H, S, HIDDEN)

    # Head-major QKV projection: one batched MXU issue per tensor; no per-head
    # lane slicing and no in-kernel transposes.
    q = jnp.einsum("hsk,hkd->hsd", hb, wq_ref[...],
                   preferred_element_type=jnp.float32)            # (H, S, D)
    k = jnp.einsum("hsk,hkd->hsd", hb, wk_ref[...],
                   preferred_element_type=jnp.float32)
    v = jnp.einsum("hsk,hkd->hsd", hb, wv_ref[...],
                   preferred_element_type=jnp.float32)

    scale = jnp.float32(1.0 / math.sqrt(D))
    q = (q + qb_ref[...]) * scale                                 # + q_bias, hoisted scale
    v = v + vb_ref[...]                                           # + v_bias

    # Attention scores for all heads at once: (H, Sq, Sk).
    scores = jnp.einsum("hqd,hkd->hqk", q, k,
                        preferred_element_type=jnp.float32)
    # bias_ref already holds rel_pos + rel_2d_pos + additive key mask
    # (pre-summed in the wrapper: single DMA, no per-head select/broadcast).
    scores = scores + bias_ref[0]

    # Softmax over keys in float32 (matches F.softmax(..., dtype=float32)).
    m = jnp.max(scores, axis=-1, keepdims=True)
    e = jnp.exp(scores - m)
    denom = jnp.sum(e, axis=-1, keepdims=True)
    probs = e * pl.reciprocal(denom, approx=True)                 # EUP slot, ~free
    # TODO(synk): attention-probs dropout omitted (inference / p=0.0 path).

    ctx = jnp.einsum("hqk,hkd->hqd", probs, v,
                     preferred_element_type=jnp.float32)          # (H, S, D)

    # Re-assemble (S, HIDDEN): single lane-dense store per batch element
    # instead of H narrow (width-D) column stores.
    ctx_sd = jnp.concatenate([ctx[i] for i in range(H)], axis=-1)  # (S, HIDDEN)
    out_ref[0] = ctx_sd.astype(out_ref.dtype)


def layoutlmv2_self_attention(hidden_states, w_qkv, q_bias, v_bias,
                              rel_pos, rel_2d_pos, attention_mask):
    B, S, Hn = hidden_states.shape
    H = rel_pos.shape[1]
    D = Hn // H

    # ---- wrapper-side layout plumbing (cheap XLA ops, no kernel compute) ----
    def head_major(w2d):                       # (HIDDEN, HIDDEN) -> (H, HIDDEN, D)
        return jnp.transpose(w2d.reshape(Hn, H, D), (1, 0, 2))

    wq = head_major(w_qkv[:, 0 * Hn:1 * Hn])
    wk = head_major(w_qkv[:, 1 * Hn:2 * Hn])
    wv = head_major(w_qkv[:, 2 * Hn:3 * Hn])
    qb = q_bias.reshape(H, 1, D)
    vb = v_bias.reshape(H, 1, D)

    # Pre-sum the two additive attention biases and fold the key mask in as an
    # additive term: halves the (B,H,S,S) bias DMA traffic and removes the
    # per-head where/broadcast from the kernel.
    mask_add = jnp.where(attention_mask != 0,
                         jnp.float32(_MASK_NEG), jnp.float32(0.0))    # (B, 1, S)
    bias = (rel_pos + rel_2d_pos).astype(jnp.float32) + mask_add[:, :, None, :]

    # grid=(B,) "parallel": one step per batch element.  B=2 keeps both
    # TensorCores busy on v7x; on v5e/v6e the extra step is tiny overhead.
    return pl.pallas_call(
        _self_attention_kernel,
        out_shape=jax.ShapeDtypeStruct((B, S, Hn), hidden_states.dtype),
        grid=(B,),
        in_specs=[
            pl.BlockSpec((1, S, Hn), lambda b: (b, 0, 0)),        # hidden_states
            pl.BlockSpec((H, Hn, D), lambda b: (0, 0, 0)),        # W_q (head-major)
            pl.BlockSpec((H, Hn, D), lambda b: (0, 0, 0)),        # W_k (head-major)
            pl.BlockSpec((H, Hn, D), lambda b: (0, 0, 0)),        # W_v (head-major)
            pl.BlockSpec((H, 1, D), lambda b: (0, 0, 0)),         # q_bias
            pl.BlockSpec((H, 1, D), lambda b: (0, 0, 0)),         # v_bias
            pl.BlockSpec((1, H, S, S), lambda b: (b, 0, 0, 0)),   # rel+2d bias + mask
        ],
        out_specs=pl.BlockSpec((1, S, Hn), lambda b: (b, 0, 0)),
        compiler_params=pltpu.CompilerParams(
            dimension_semantics=("parallel",)),
    )(hidden_states, wq, wk, wv, qb, vb, bias)


def _reference(hidden_states, w_qkv, q_bias, v_bias, rel_pos, rel_2d_pos, attention_mask):
    """Pure-JAX mirror of the PyTorch forward (fast_qkv, eval-mode dropout)."""
    B, S, Hn = hidden_states.shape
    qkv = hidden_states @ w_qkv
    q, k, v = jnp.split(qkv, 3, axis=-1)
    q = q + q_bias
    v = v + v_bias

    def heads(x):
        return x.reshape(B, S, NUM_HEADS, HEAD_DIM).transpose(0, 2, 1, 3)

    qh, kh, vh = heads(q), heads(k), heads(v)
    qh = qh / math.sqrt(HEAD_DIM)
    scores = jnp.einsum("bhqd,bhkd->bhqk", qh, kh).astype(jnp.float32)
    scores = scores + rel_pos + rel_2d_pos
    mask = (attention_mask != 0)[:, None, :, :]          # (B,1,1,S)
    scores = jnp.where(mask, -jnp.inf, scores)
    probs = jax.nn.softmax(scores, axis=-1)
    ctx = jnp.einsum("bhqk,bhkd->bhqd", probs, vh)
    return ctx.transpose(0, 2, 1, 3).reshape(B, S, Hn)


if __name__ == "__main__":
    key = jax.random.PRNGKey(0)
    k1, k2, k3, k4, k5, k6 = jax.random.split(key, 6)

    hidden_states = jax.random.normal(k1, (BATCH, SEQ, HIDDEN), dtype=jnp.float32)
    # torch Linear(hidden, 3*hidden, bias=False); stored here as (in, out).
    w_qkv = jax.random.normal(k2, (HIDDEN, 3 * HIDDEN), dtype=jnp.float32) * 0.05
    # nn.Parameter(torch.zeros(1, 1, all_head_size)) -- use small deterministic
    # values so the bias-add path is actually exercised.
    q_bias = jax.random.normal(k3, (1, 1, HIDDEN), dtype=jnp.float32) * 0.1
    v_bias = jax.random.normal(k4, (1, 1, HIDDEN), dtype=jnp.float32) * 0.1
    rel_pos = jax.random.normal(k5, (BATCH, NUM_HEADS, SEQ, SEQ), dtype=jnp.float32) * 0.1
    rel_2d_pos = jax.random.normal(k6, (BATCH, NUM_HEADS, SEQ, SEQ), dtype=jnp.float32) * 0.1

    # nonzero == masked key (True in torch masked_fill_); keep at least one
    # unmasked key per row so softmax stays finite.
    attention_mask = jnp.zeros((BATCH, 1, SEQ), dtype=jnp.int32)
    attention_mask = attention_mask.at[1, 0, SEQ - 2:].set(1)

    out = layoutlmv2_self_attention(hidden_states, w_qkv, q_bias, v_bias,
                                    rel_pos, rel_2d_pos, attention_mask)
    out = jax.block_until_ready(out)

    ref = _reference(hidden_states, w_qkv, q_bias, v_bias,
                     rel_pos, rel_2d_pos, attention_mask)
    assert out.shape == (BATCH, SEQ, HIDDEN)
    # Tolerance accounts for pl.reciprocal(approx=True) in the softmax
    # denominator (EUP approximate reciprocal, ~1e-4 relative error).
    assert jnp.allclose(out, ref, atol=1e-2, rtol=1e-2), "mismatch vs JAX reference"
    print("KERNEL_OK")
</pallas_src>

<mosaic_0001>
module attributes {stable_mosaic.version = 11 : i64} {
  func.func @_self_attention_kernel(%arg0: i32, %arg1: memref<1x8x32xf32, #tpu.memory_space<vmem>>, %arg2: memref<4x32x8xf32, #tpu.memory_space<vmem>>, %arg3: memref<4x32x8xf32, #tpu.memory_space<vmem>>, %arg4: memref<4x32x8xf32, #tpu.memory_space<vmem>>, %arg5: memref<4x1x8xf32, #tpu.memory_space<vmem>>, %arg6: memref<4x1x8xf32, #tpu.memory_space<vmem>>, %arg7: memref<1x4x8x8xf32, #tpu.memory_space<vmem>>, %arg8: memref<1x8x32xf32, #tpu.memory_space<vmem>>) attributes {dimension_semantics = [#tpu.dimension_semantics<parallel>], iteration_bounds = array<i64: 2>, scalar_prefetch = 0 : i64, scratch_operands = 0 : i64, tpu.core_type = #tpu.core_type<tc>, window_params = [{transform_indices = @transform_0, window_bounds = array<i64: 1, 8, 32>}, {pipeline_mode = #tpu.pipeline_mode<synchronous>, transform_indices = @transform_1, window_bounds = array<i64: 4, 32, 8>}, {pipeline_mode = #tpu.pipeline_mode<synchronous>, transform_indices = @transform_2, window_bounds = array<i64: 4, 32, 8>}, {pipeline_mode = #tpu.pipeline_mode<synchronous>, transform_indices = @transform_3, window_bounds = array<i64: 4, 32, 8>}, {pipeline_mode = #tpu.pipeline_mode<synchronous>, transform_indices = @transform_4, window_bounds = array<i64: 4, 1, 8>}, {pipeline_mode = #tpu.pipeline_mode<synchronous>, transform_indices = @transform_5, window_bounds = array<i64: 4, 1, 8>}, {transform_indices = @transform_6, window_bounds = array<i64: 1, 4, 8, 8>}, {transform_indices = @transform_7, window_bounds = array<i64: 1, 8, 32>}]} {
    %c0 = arith.constant 0 : index
    %c0_0 = arith.constant 0 : index
    %c0_1 = arith.constant 0 : index
    %0 = vector.load %arg1[%c0, %c0_0, %c0_1] : memref<1x8x32xf32, #tpu.memory_space<vmem>>, vector<1x8x32xf32>
    %1 = vector.shape_cast %0 : vector<1x8x32xf32> to vector<8x32xf32>
    %2 = vector.shape_cast %1 : vector<8x32xf32> to vector<1x8x32xf32>
    %3 = vector.shape_cast %2 : vector<1x8x32xf32> to vector<1x8x32xf32>
    %4 = vector.broadcast %3 : vector<1x8x32xf32> to vector<4x8x32xf32>
    %c0_2 = arith.constant 0 : index
    %c0_3 = arith.constant 0 : index
    %c0_4 = arith.constant 0 : index
    %5 = vector.load %arg2[%c0_2, %c0_3, %c0_4] : memref<4x32x8xf32, #tpu.memory_space<vmem>>, vector<4x32x8xf32>
    "tpu.trace_start"() <{level = 10 : i32, message = "hsk,hkd->hsd"}> : () -> ()
    %cst = arith.constant dense<0.000000e+00> : vector<4x8x8xf32>
    %6 = tpu.matmul %4, %5, %cst {dimension_numbers = #tpu.dot_dimension_numbers<[2], [1], [1], [2], [0, 0, 0, 1, 1, 2], [0], [0]>} : vector<4x8x32xf32>, vector<4x32x8xf32>, vector<4x8x8xf32> -> vector<4x8x8xf32>
    "tpu.trace_stop"() : () -> ()
    %c0_5 = arith.constant 0 : index
    %c0_6 = arith.constant 0 : index
    %c0_7 = arith.constant 0 : index
    %7 = vector.load %arg3[%c0_5, %c0_6, %c0_7] : memref<4x32x8xf32, #tpu.memory_space<vmem>>, vector<4x32x8xf32>
    "tpu.trace_start"() <{level = 10 : i32, message = "hsk,hkd->hsd"}> : () -> ()
    %cst_8 = arith.constant dense<0.000000e+00> : vector<4x8x8xf32>
    %8 = tpu.matmul %4, %7, %cst_8 {dimension_numbers = #tpu.dot_dimension_numbers<[2], [1], [1], [2], [0, 0, 0, 1, 1, 2], [0], [0]>} : vector<4x8x32xf32>, vector<4x32x8xf32>, vector<4x8x8xf32> -> vector<4x8x8xf32>
    "tpu.trace_stop"() : () -> ()
    %c0_9 = arith.constant 0 : index
    %c0_10 = arith.constant 0 : index
    %c0_11 = arith.constant 0 : index
    %9 = vector.load %arg4[%c0_9, %c0_10, %c0_11] : memref<4x32x8xf32, #tpu.memory_space<vmem>>, vector<4x32x8xf32>
    "tpu.trace_start"() <{level = 10 : i32, message = "hsk,hkd->hsd"}> : () -> ()
    %cst_12 = arith.constant dense<0.000000e+00> : vector<4x8x8xf32>
    %10 = tpu.matmul %4, %9, %cst_12 {dimension_numbers = #tpu.dot_dimension_numbers<[2], [1], [1], [2], [0, 0, 0, 1, 1, 2], [0], [0]>} : vector<4x8x32xf32>, vector<4x32x8xf32>, vector<4x8x8xf32> -> vector<4x8x8xf32>
    "tpu.trace_stop"() : () -> ()
    %c0_13 = arith.constant 0 : index
    %c0_14 = arith.constant 0 : index
    %c0_15 = arith.constant 0 : index
    %11 = vector.load %arg5[%c0_13, %c0_14, %c0_15] : memref<4x1x8xf32, #tpu.memory_space<vmem>>, vector<4x1x8xf32>
    %12 = vector.broadcast %11 : vector<4x1x8xf32> to vector<4x8x8xf32>
    %13 = arith.addf %6, %12 : vector<4x8x8xf32>
    %cst_16 = arith.constant 0.353553385 : f32
    %14 = vector.broadcast %cst_16 : f32 to vector<4x8x8xf32>
    %15 = arith.mulf %13, %14 : vector<4x8x8xf32>
    %c0_17 = arith.constant 0 : index
    %c0_18 = arith.constant 0 : index
    %c0_19 = arith.constant 0 : index
    %16 = vector.load %arg6[%c0_17, %c0_18, %c0_19] : memref<4x1x8xf32, #tpu.memory_space<vmem>>, vector<4x1x8xf32>
    %17 = vector.broadcast %16 : vector<4x1x8xf32> to vector<4x8x8xf32>
    %18 = arith.addf %10, %17 : vector<4x8x8xf32>
    "tpu.trace_start"() <{level = 10 : i32, message = "hqd,hkd->hqk"}> : () -> ()
    %cst_20 = arith.constant dense<0.000000e+00> : vector<4x8x8xf32>
    %19 = tpu.matmul %15, %8, %cst_20 {dimension_numbers = #tpu.dot_dimension_numbers<[2], [2], [1], [1], [0, 0, 0, 1, 1, 1], [0], [0]>} : vector<4x8x8xf32>, vector<4x8x8xf32>, vector<4x8x8xf32> -> vector<4x8x8xf32>
    "tpu.trace_stop"() : () -> ()
    %c0_21 = arith.constant 0 : index
    %c0_22 = arith.constant 0 : index
    %c0_23 = arith.constant 0 : index
    %c0_24 = arith.constant 0 : index
    %20 = vector.load %arg7[%c0_21, %c0_22, %c0_23, %c0_24] : memref<1x4x8x8xf32, #tpu.memory_space<vmem>>, vector<1x4x8x8xf32>
    %21 = vector.shape_cast %20 : vector<1x4x8x8xf32> to vector<4x8x8xf32>
    %22 = arith.addf %19, %21 : vector<4x8x8xf32>
    %cst_25 = arith.constant dense<0xFF800000> : vector<4x8xf32>
    %23 = vector.multi_reduction <maximumf>, %22, %cst_25 [2] : vector<4x8x8xf32> to vector<4x8xf32>
    %24 = vector.shape_cast %23 : vector<4x8xf32> to vector<4x8x1xf32>
    %25 = vector.broadcast %24 : vector<4x8x1xf32> to vector<4x8x8xf32>
    %26 = arith.subf %22, %25 : vector<4x8x8xf32>
    %27 = math.exp %26 : vector<4x8x8xf32>
    %cst_26 = arith.constant dense<0.000000e+00> : vector<4x8xf32>
    %28 = vector.multi_reduction <add>, %27, %cst_26 [2] : vector<4x8x8xf32> to vector<4x8xf32>
    %29 = vector.shape_cast %28 : vector<4x8xf32> to vector<4x8x1xf32>
    %30 = tpu.reciprocal %29 {approx = true} : vector<4x8x1xf32> -> vector<4x8x1xf32>
    %31 = vector.broadcast %30 : vector<4x8x1xf32> to vector<4x8x8xf32>
    %32 = arith.mulf %27, %31 : vector<4x8x8xf32>
    "tpu.trace_start"() <{level = 10 : i32, message = "hqk,hkd->hqd"}> : () -> ()
    %cst_27 = arith.constant dense<0.000000e+00> : vector<4x8x8xf32>
    %33 = tpu.matmul %32, %18, %cst_27 {dimension_numbers = #tpu.dot_dimension_numbers<[2], [1], [1], [2], [0, 0, 0, 1, 1, 2], [0], [0]>} : vector<4x8x8xf32>, vector<4x8x8xf32>, vector<4x8x8xf32> -> vector<4x8x8xf32>
    "tpu.trace_stop"() : () -> ()
    %34 = vector.extract_strided_slice %33 {offsets = [0, 0, 0], sizes = [1, 8, 8], strides = [1, 1, 1]} : vector<4x8x8xf32> to vector<1x8x8xf32>
    %35 = vector.shape_cast %34 : vector<1x8x8xf32> to vector<8x8xf32>
    %36 = vector.extract_strided_slice %33 {offsets = [1, 0, 0], sizes = [1, 8, 8], strides = [1, 1, 1]} : vector<4x8x8xf32> to vector<1x8x8xf32>
    %37 = vector.shape_cast %36 : vector<1x8x8xf32> to vector<8x8xf32>
    %38 = vector.extract_strided_slice %33 {offsets = [2, 0, 0], sizes = [1, 8, 8], strides = [1, 1, 1]} : vector<4x8x8xf32> to vector<1x8x8xf32>
    %39 = vector.shape_cast %38 : vector<1x8x8xf32> to vector<8x8xf32>
    %40 = vector.extract_strided_slice %33 {offsets = [3, 0, 0], sizes = [1, 8, 8], strides = [1, 1, 1]} : vector<4x8x8xf32> to vector<1x8x8xf32>
    %41 = vector.shape_cast %40 : vector<1x8x8xf32> to vector<8x8xf32>
    %42 = tpu.concatenate %35, %37, %39, %41 in 1 : vector<8x8xf32>, vector<8x8xf32>, vector<8x8xf32>, vector<8x8xf32> -> vector<8x32xf32>
    %c0_28 = arith.constant 0 : index
    %c0_29 = arith.constant 0 : index
    %c0_30 = arith.constant 0 : index
    %43 = vector.load %arg8[%c0_28, %c0_29, %c0_30] : memref<1x8x32xf32, #tpu.memory_space<vmem>>, vector<1x8x32xf32>
    %44 = vector.shape_cast %43 : vector<1x8x32xf32> to vector<8x32xf32>
    %45 = vector.shape_cast %42 : vector<8x32xf32> to vector<1x8x32xf32>
    tpu.vector_store %arg8[%c0_28, %c0_29, %c0_30], %45 {strides = array<i32>} : memref<1x8x32xf32, #tpu.memory_space<vmem>>, vector<1x8x32xf32>,
    return
  }
  func.func @transform_0(%arg0: i32) -> (i32, i32, i32) {
    %c0_i32 = arith.constant 0 : i32
    %c0_i32_0 = arith.constant 0 : i32
    %c0_i32_1 = arith.constant 0 : i32
    return %arg0, %c0_i32, %c0_i32_0 : i32, i32, i32
  }
  func.func @transform_1(%arg0: i32) -> (i32, i32, i32) {
    %c0_i32 = arith.constant 0 : i32
    %c0_i32_0 = arith.constant 0 : i32
    %c0_i32_1 = arith.constant 0 : i32
    %c0_i32_2 = arith.constant 0 : i32
    return %c0_i32, %c0_i32_0, %c0_i32_1 : i32, i32, i32
  }
  func.func @transform_2(%arg0: i32) -> (i32, i32, i32) {
    %c0_i32 = arith.constant 0 : i32
    %c0_i32_0 = arith.constant 0 : i32
    %c0_i32_1 = arith.constant 0 : i32
    %c0_i32_2 = arith.constant 0 : i32
    return %c0_i32, %c0_i32_0, %c0_i32_1 : i32, i32, i32
  }
  func.func @transform_3(%arg0: i32) -> (i32, i32, i32) {
    %c0_i32 = arith.constant 0 : i32
    %c0_i32_0 = arith.constant 0 : i32
    %c0_i32_1 = arith.constant 0 : i32
    %c0_i32_2 = arith.constant 0 : i32
    return %c0_i32, %c0_i32_0, %c0_i32_1 : i32, i32, i32
  }
  func.func @transform_4(%arg0: i32) -> (i32, i32, i32) {
    %c0_i32 = arith.constant 0 : i32
    %c0_i32_0 = arith.constant 0 : i32
    %c0_i32_1 = arith.constant 0 : i32
    %c0_i32_2 = arith.constant 0 : i32
    return %c0_i32, %c0_i32_0, %c0_i32_1 : i32, i32, i32
  }
  func.func @transform_5(%arg0: i32) -> (i32, i32, i32) {
    %c0_i32 = arith.constant 0 : i32
    %c0_i32_0 = arith.constant 0 : i32
    %c0_i32_1 = arith.constant 0 : i32
    %c0_i32_2 = arith.constant 0 : i32
    return %c0_i32, %c0_i32_0, %c0_i32_1 : i32, i32, i32
  }
  func.func @transform_6(%arg0: i32) -> (i32, i32, i32, i32) {
    %c0_i32 = arith.constant 0 : i32
    %c0_i32_0 = arith.constant 0 : i32
    %c0_i32_1 = arith.constant 0 : i32
    %c0_i32_2 = arith.constant 0 : i32
    return %arg0, %c0_i32, %c0_i32_0, %c0_i32_1 : i32, i32, i32, i32
  }
  func.func @transform_7(%arg0: i32) -> (i32, i32, i32) {
    %c0_i32 = arith.constant 0 : i32
    %c0_i32_0 = arith.constant 0 : i32
    %c0_i32_1 = arith.constant 0 : i32
    return %arg0, %c0_i32, %c0_i32_0 : i32, i32, i32
  }
}

</mosaic_0001>

<llo_original>
// kernel: tpu_custom_call.1
$region0: #{tpu_custom_call.1}
  #allocation0 [shape = 'u32[]', space=smem, size = 0x4, offset = 0x4, fixed_abs, tag = 'smem constant byte address 0x4 - core index']
  #allocation1 [shape = 'u32[144,128]{1,0:T(1,128)}', space=vmem, size = 0x12000, scoped, tag = 'internal scratch']
  %s0 = inlined_call_operand.vmem [shape: f32[2,8,32], index: 0, kind: input, shape index: {}]
  %s1 = inlined_call_operand.vmem [shape: f32[4,32,8], index: 1, kind: input, shape index: {}]
  %s2 = inlined_call_operand.vmem [shape: f32[4,32,8], index: 2, kind: input, shape index: {}]
  %s3 = inlined_call_operand.vmem [shape: f32[4,32,8], index: 3, kind: input, shape index: {}]
  %s4 = inlined_call_operand.vmem [shape: f32[4,1,8], index: 4, kind: input, shape index: {}]
  %s5 = inlined_call_operand.vmem [shape: f32[4,1,8], index: 5, kind: input, shape index: {}]
  %s6 = inlined_call_operand.vmem [shape: f32[2,4,8,8], index: 6, kind: input, shape index: {}]
  %s7 = inlined_call_operand.hbm [shape: f32[2,8,32], index: 7, kind: output, shape index: {}]
  %s8 = sld [smem:[#allocation0]]
  $region61: #{tpu_custom_call.1} parent=0
    _
  %s10 = ssub.s32 1, %s8
  %s11 = scalar_select 0, %s10, %s8
  $region1: #{tpu_custom_call.1} parent=0
    #allocation2 [shape = 'u8[8192]{0}', space=vmem, size = 0x2000, scoped, tag = 'output window, operand 0']
    #allocation3 [shape = 's32[2]{0}', space=sflag, size = 0x8, scoped, tag = 'scoped memory for tpu_custom_call.1']
    %12 = vsyncpa [#allocation3], 0
    %s13 = scalar_lea.sflag [#allocation3], 1
    %14 = vsyncpa %s13, 0
    loop: start=0, step=1, limit=4
    $region2: #{tpu_custom_call.1} parent=1 // loop_pre_header
      _
    $region3: #{tpu_custom_call.1} parent=1 // loop_header
      %s16 = sphi 0, %s20
      %p17 = scmp.ge.s32.totalorder %s16, 4
      %s26 = sphi 0, %s28
      %s29 = sphi 0, %s26
      %s30 = sphi 0, %s29
      %s46 = sphi 0, %s30
      %s50 = sphi 0, %s50
      %s52 = sphi 0, %s50
      %s53 = sphi 0, %s52
      %s67 = sphi 0, %s53
      %s71 = sphi 0, %s71
      %s73 = sphi 0, %s71
      %s74 = sphi 0, %s73
      %s88 = sphi 0, %s74
      %s92 = sphi 0, %s92
      %s94 = sphi 0, %s92
      %s95 = sphi 0, %s94
      %s109 = sphi 0, %s95
      %s113 = sphi 0, %s113
      %s115 = sphi 0, %s113
      %s116 = sphi 0, %s115
      %s130 = sphi 0, %s116
      %s134 = sphi 0, %s134
      %s136 = sphi 0, %s134
      %s137 = sphi 0, %s136
      %s151 = sphi 0, %s137
      %s157 = sphi 0, %s159
      %s160 = sphi 0, %s157
      %s161 = sphi 0, %s160
      %s177 = sphi 0, %s161
      %s183 = sphi 0, %s185
      %s186 = sphi 0, %s183
      %s187 = sphi 0, %s186
      %s203 = sphi 0, %s187
    $region4: #{tpu_custom_call.1} parent=1 // loop_header_branch
      %19 = sbr.rel (%p17) target = $region8
    $region5: #{tpu_custom_call.1} parent=1 // loop_body
      %s21 = ssub.s32 %s16, 1
      %s22 = ssub.s32 %s16, 2
      %s23 = sadd.s32 %s16, 1
      %s24 = ssub.s32 %s16, %s23
      %p25 = scmp.eq.s32.totalorder %s24, 0
      %s27 = sadd.s32 %s26, 1
      %s28 = scalar_select %p25, %s26, %s27
      %p31 = pneg %p25
      %p32 = scmp.eq.s32.totalorder %s16, 1
      %p33 = por %p31, %p32
      %p34 = scmp.ne.s32.totalorder %s26, %s29
      %p35 = scmp.eq.s32.totalorder %s16, 0
      %p36 = por %p34, %p35
      %p37 = scmp.ne.s32.totalorder %s26, %s29
      %p38 = scmp.eq.s32.totalorder %s21, 1
      %p39 = por %p37, %p38
      %p40 = scmp.ne.s32.totalorder %s29, %s30
      %p41 = scmp.eq.s32.totalorder %s21, 0
      %p42 = por %p40, %p41
      %p43 = scmp.ne.s32.totalorder %s29, %s30
      %p44 = scmp.eq.s32.totalorder %s22, 1
      %p45 = por %p43, %p44
      %p47 = scmp.ne.s32.totalorder %s30, %s46
      %p48 = scmp.eq.s32.totalorder %s22, 0
      %p49 = por %p47, %p48
      %s51 = sadd.s32 %s50, 1
      %p54 = scmp.eq.s32.totalorder %s16, 1
      %p55 = scmp.ne.s32.totalorder %s50, %s52
      %p56 = scmp.eq.s32.totalorder %s16, 0
      %p57 = por %p55, %p56
      %p58 = scmp.ne.s32.totalorder %s50, %s52
      %p59 = scmp.eq.s32.totalorder %s21, 1
      %p60 = por %p58, %p59
      %p61 = scmp.ne.s32.totalorder %s52, %s53
      %p62 = scmp.eq.s32.totalorder %s21, 0
      %p63 = por %p61, %p62
      %p64 = scmp.ne.s32.totalorder %s52, %s53
      %p65 = scmp.eq.s32.totalorder %s22, 1
      %p66 = por %p64, %p65
      %p68 = scmp.ne.s32.totalorder %s53, %s67
      %p69 = scmp.eq.s32.totalorder %s22, 0
      %p70 = por %p68, %p69
      %s72 = sadd.s32 %s71, 1
      %p75 = scmp.eq.s32.totalorder %s16, 1
      %p76 = scmp.ne.s32.totalorder %s71, %s73
      %p77 = scmp.eq.s32.totalorder %s16, 0
      %p78 = por %p76, %p77
      %p79 = scmp.ne.s32.totalorder %s71, %s73
      %p80 = scmp.eq.s32.totalorder %s21, 1
      %p81 = por %p79, %p80
      %p82 = scmp.ne.s32.totalorder %s73, %s74
      %p83 = scmp.eq.s32.totalorder %s21, 0
      %p84 = por %p82, %p83
      %p85 = scmp.ne.s32.totalorder %s73, %s74
      %p86 = scmp.eq.s32.totalorder %s22, 1
      %p87 = por %p85, %p86
      %p89 = scmp.ne.s32.totalorder %s74, %s88
      %p90 = scmp.eq.s32.totalorder %s22, 0
      %p91 = por %p89, %p90
      %s93 = sadd.s32 %s92, 1
      %p96 = scmp.eq.s32.totalorder %s16, 1
      %p97 = scmp.ne.s32.totalorder %s92, %s94
      %p98 = scmp.eq.s32.totalorder %s16, 0
      %p99 = por %p97, %p98
      %p100 = scmp.ne.s32.totalorder %s92, %s94
      %p101 = scmp.eq.s32.totalorder %s21, 1
      %p102 = por %p100, %p101
      %p103 = scmp.ne.s32.totalorder %s94, %s95
      %p104 = scmp.eq.s32.totalorder %s21, 0
      %p105 = por %p103, %p104
      %p106 = scmp.ne.s32.totalorder %s94, %s95
      %p107 = scmp.eq.s32.totalorder %s22, 1
      %p108 = por %p106, %p107
      %p110 = scmp.ne.s32.totalorder %s95, %s109
      %p111 = scmp.eq.s32.totalorder %s22, 0
      %p112 = por %p110, %p111
      %s114 = sadd.s32 %s113, 1
      %p117 = scmp.eq.s32.totalorder %s16, 1
      %p118 = scmp.ne.s32.totalorder %s113, %s115
      %p119 = scmp.eq.s32.totalorder %s16, 0
      %p120 = por %p118, %p119
      %p121 = scmp.ne.s32.totalorder %s113, %s115
      %p122 = scmp.eq.s32.totalorder %s21, 1
      %p123 = por %p121, %p122
      %p124 = scmp.ne.s32.totalorder %s115, %s116
      %p125 = scmp.eq.s32.totalorder %s21, 0
      %p126 = por %p124, %p125
      %p127 = scmp.ne.s32.totalorder %s115, %s116
      %p128 = scmp.eq.s32.totalorder %s22, 1
      %p129 = por %p127, %p128
      %p131 = scmp.ne.s32.totalorder %s116, %s130
      %p132 = scmp.eq.s32.totalorder %s22, 0
      %p133 = por %p131, %p132
      %s135 = sadd.s32 %s134, 1
      %p138 = scmp.eq.s32.totalorder %s16, 1
      %p139 = scmp.ne.s32.totalorder %s134, %s136
      %p140 = scmp.eq.s32.totalorder %s16, 0
      %p141 = por %p139, %p140
      %p142 = scmp.ne.s32.totalorder %s134, %s136
      %p143 = scmp.eq.s32.totalorder %s21, 1
      %p144 = por %p142, %p143
      %p145 = scmp.ne.s32.totalorder %s136, %s137
      %p146 = scmp.eq.s32.totalorder %s21, 0
      %p147 = por %p145, %p146
      %p148 = scmp.ne.s32.totalorder %s136, %s137
      %p149 = scmp.eq.s32.totalorder %s22, 1
      %p150 = por %p148, %p149
      %p152 = scmp.ne.s32.totalorder %s137, %s151
      %p153 = scmp.eq.s32.totalorder %s22, 0
      %p154 = por %p152, %p153
      %s155 = ssub.s32 %s16, %s23
      %p156 = scmp.eq.s32.totalorder %s155, 0
      %s158 = sadd.s32 %s157, 1
      %s159 = scalar_select %p156, %s157, %s158
      %p162 = pneg %p156
      %p163 = scmp.eq.s32.totalorder %s16, 1
      %p164 = por %p162, %p163
      %p165 = scmp.ne.s32.totalorder %s157, %s160
      %p166 = scmp.eq.s32.totalorder %s16, 0
      %p167 = por %p165, %p166
      %p168 = scmp.ne.s32.totalorder %s157, %s160
      %p169 = scmp.eq.s32.totalorder %s21, 1
      %p170 = por %p168, %p169
      %p171 = scmp.ne.s32.totalorder %s160, %s161
      %p172 = scmp.eq.s32.totalorder %s21, 0
      %p173 = por %p171, %p172
      %p174 = scmp.ne.s32.totalorder %s160, %s161
      %p175 = scmp.eq.s32.totalorder %s22, 1
      %p176 = por %p174, %p175
      %p178 = scmp.ne.s32.totalorder %s161, %s177
      %p179 = scmp.eq.s32.totalorder %s22, 0
      %p180 = por %p178, %p179
      %s181 = ssub.s32 %s16, %s23
      %p182 = scmp.eq.s32.totalorder %s181, 0
      %s184 = sadd.s32 %s183, 1
      %s185 = scalar_select %p182, %s183, %s184
      %p188 = pneg %p182
      %p189 = scmp.eq.s32.totalorder %s16, 1
      %p190 = por %p188, %p189
      %p191 = scmp.ne.s32.totalorder %s183, %s186
      %p192 = scmp.eq.s32.totalorder %s16, 0
      %p193 = por %p191, %p192
      %p194 = scmp.ne.s32.totalorder %s183, %s186
      %p195 = scmp.eq.s32.totalorder %s21, 1
      %p196 = por %p194, %p195
      %p197 = scmp.ne.s32.totalorder %s186, %s187
      %p198 = scmp.eq.s32.totalorder %s21, 0
      %p199 = por %p197, %p198
      %p200 = scmp.ne.s32.totalorder %s186, %s187
      %p201 = scmp.eq.s32.totalorder %s22, 1
      %p202 = por %p200, %p201
      %p204 = scmp.ne.s32.totalorder %s187, %s203
      %p205 = scmp.eq.s32.totalorder %s22, 0
      %p206 = por %p204, %p205
      %p207 = scmp.le.s32.totalorder 1, %s16
      %p208 = scmp.lt.s32.totalorder %s16, 3
      %p209 = pnand %p207, %p208
      %p210 = pneg %p209
      // Predicated region
      $region9: #{tpu_custom_call.1} parent=5 // pred_check
        _
      $region10: #{tpu_custom_call.1} parent=5 // pred_check_branch
        %212 = sbr.rel (%p209) target = $region12
      $region11: #{tpu_custom_call.1} parent=5 // pred_region
        %s213 = ssub.s32 %s16, 1
        // Predicated region
        $region13: #{tpu_custom_call.1} parent=11 // pred_check
          %p214 = pneg %p63
        $region14: #{tpu_custom_call.1} parent=11 // pred_check_branch
          %216 = sbr.rel (%p214) target = $region16
        $region15: #{tpu_custom_call.1} parent=11 // pred_region
          _
        $region16: #{tpu_custom_call.1} parent=11 // pred_fallthru
          _
        // Predicated region
        $region17: #{tpu_custom_call.1} parent=11 // pred_check
          %p217 = pneg %p84
        $region18: #{tpu_custom_call.1} parent=11 // pred_check_branch
          %219 = sbr.rel (%p217) target = $region20
        $region19: #{tpu_custom_call.1} parent=11 // pred_region
          _
        $region20: #{tpu_custom_call.1} parent=11 // pred_fallthru
          _
        // Predicated region
        $region21: #{tpu_custom_call.1} parent=11 // pred_check
          %p220 = pneg %p105
        $region22: #{tpu_custom_call.1} parent=11 // pred_check_branch
          %222 = sbr.rel (%p220) target = $region24
        $region23: #{tpu_custom_call.1} parent=11 // pred_region
          _
        $region24: #{tpu_custom_call.1} parent=11 // pred_fallthru
          _
        // Predicated region
        $region25: #{tpu_custom_call.1} parent=11 // pred_check
          %p223 = pneg %p126
        $region26: #{tpu_custom_call.1} parent=11 // pred_check_branch
          %225 = sbr.rel (%p223) target = $region28
        $region27: #{tpu_custom_call.1} parent=11 // pred_region
          _
        $region28: #{tpu_custom_call.1} parent=11 // pred_fallthru
          _
        // Predicated region
        $region29: #{tpu_custom_call.1} parent=11 // pred_check
          %p226 = pneg %p147
        $region30: #{tpu_custom_call.1} parent=11 // pred_check_branch
          %228 = sbr.rel (%p226) target = $region32
        $region31: #{tpu_custom_call.1} parent=11 // pred_region
          _
        $region32: #{tpu_custom_call.1} parent=11 // pred_fallthru
          _
      $region12: #{tpu_custom_call.1} parent=5 // pred_fallthru
        _
      %p229 = scmp.lt.s32.totalorder %s16, 2
      // Predicated region
      $region33: #{tpu_custom_call.1} parent=5 // pred_check
        %p230 = pneg %p229
      $region34: #{tpu_custom_call.1} parent=5 // pred_check_branch
        %232 = sbr.rel (%p230) target = $region36
      $region35: #{tpu_custom_call.1} parent=5 // pred_region
        // Predicated region
        $region37: #{tpu_custom_call.1} parent=35 // pred_check
          %p233 = pneg %p36
        $region38: #{tpu_custom_call.1} parent=35 // pred_check_branch
          %235 = sbr.rel (%p233) target = $region40
        $region39: #{tpu_custom_call.1} parent=35 // pred_region
          %p236 = scmp.lt.s32.totalorder %s16, 1
          %s237 = scalar_select %p236, %s16, 1
          %s238 = smul.addr %s237, 8
          %s239 = scalar_lea.vmem %s0, %s238
        $region40: #{tpu_custom_call.1} parent=35 // pred_fallthru
          _
        // Predicated region
        $region41: #{tpu_custom_call.1} parent=35 // pred_check
          %p240 = pneg %p167
        $region42: #{tpu_custom_call.1} parent=35 // pred_check_branch
          %242 = sbr.rel (%p240) target = $region44
        $region43: #{tpu_custom_call.1} parent=35 // pred_region
          %p243 = scmp.lt.s32.totalorder %s16, 1
          %s244 = scalar_select %p243, %s16, 1
          %s245 = smul.addr %s244, 4
          %s246 = smul.addr %s245, 8
          %s247 = scalar_lea.vmem %s6, %s246
        $region44: #{tpu_custom_call.1} parent=35 // pred_fallthru
          _
      $region36: #{tpu_custom_call.1} parent=5 // pred_fallthru
        _
      %p248 = scmp.le.s32.totalorder 1, %s16
      %p249 = scmp.lt.s32.totalorder %s16, 3
      %p250 = pnand %p248, %p249
      %p251 = pneg %p250
      // Predicated region
      $region45: #{tpu_custom_call.1} parent=5 // pred_check
        _
      $region46: #{tpu_custom_call.1} parent=5 // pred_check_branch
        %253 = sbr.rel (%p250) target = $region48
      $region47: #{tpu_custom_call.1} parent=5 // pred_region
        %s254 = ssub.s32 %s16, 1
        %p255 = scmp.lt.s32.totalorder %s21, 1
        %s256 = scalar_select %p255, %s21, 1
        %s257 = smul.addr %s256, 8
        %s258 = scalar_lea.vmem %s0, %s257
        %p259 = pneg %p42
        %p260 = pneg %p39
        %p261 = pneg %p63
        %p262 = pneg %p60
        %p263 = pneg %p84
        %p264 = pneg %p81
        %p265 = pneg %p105
        %p266 = pneg %p102
        %p267 = pneg %p126
        %p268 = pneg %p123
        %p269 = pneg %p147
        %p270 = pneg %p144
        %p271 = scmp.lt.s32.totalorder %s21, 1
        %s272 = scalar_select %p271, %s21, 1
        %s273 = smul.addr %s272, 4
        %s274 = smul.addr %s273, 8
        %s275 = scalar_lea.vmem %s6, %s274
        %p276 = pneg %p173
        %p277 = pneg %p170
        %p278 = pneg %p199
        %p279 = pneg %p196
        %s280 = sand.u32 %s186, 1
        %s281 = scalar_lea.sflag [#allocation3], %s280
        %s282 = sand.u32 %s186, 1
        %s283 = smul.addr %s282, 8
        %s284 = scalar_lea.vmem [#allocation2], %s283
        %p285 = scmp.lt.s32.totalorder %s21, 1
        %s286 = scalar_select %p285, %s21, 1
        %s287 = smul.addr %s286, 8
        %s288 = scalar_lea.vmem %s0, %s287
        %p289 = scmp.lt.s32.totalorder %s21, 1
        %s290 = scalar_select %p289, %s21, 1
        %s291 = smul.addr %s290, 4
        %s292 = smul.addr %s291, 8
        %s293 = scalar_lea.vmem %s6, %s292
        %v294 = vld [vmem:[%s288] sm:$0xff]
        %v295 = vld [vmem:[%s1] sm:$0xff]
        %v296 = vld [vmem:[%s1 + $0x8] sm:$0xff]
        %v297 = vld [vmem:[%s1 + $0x10] sm:$0xff]
        %v298 = vld [vmem:[%s1 + $0x18] sm:$0xff]
        %v299 = vld [vmem:[%s1 + $0x20] sm:$0xff]
        %v300 = vld [vmem:[%s1 + $0x28] sm:$0xff]
        %v301 = vld [vmem:[%s1 + $0x30] sm:$0xff]
        %v302 = vld [vmem:[%s1 + $0x38] sm:$0xff]
        %v303 = vld [vmem:[%s1 + $0x40] sm:$0xff]
        %v304 = vld [vmem:[%s1 + $0x48] sm:$0xff]
        %v305 = vld [vmem:[%s1 + $0x50] sm:$0xff]
        %v306 = vld [vmem:[%s1 + $0x58] sm:$0xff]
        %v307 = vld [vmem:[%s1 + $0x60] sm:$0xff]
        %v308 = vld [vmem:[%s1 + $0x68] sm:$0xff]
        %v309 = vld [vmem:[%s1 + $0x70] sm:$0xff]
        %v310 = vld [vmem:[%s1 + $0x78] sm:$0xff]
        %v311 = vld [vmem:[%s2] sm:$0xff]
        %v312 = vld [vmem:[%s2 + $0x8] sm:$0xff]
        %v313 = vld [vmem:[%s2 + $0x10] sm:$0xff]
        %v314 = vld [vmem:[%s2 + $0x18] sm:$0xff]
        %v315 = vld [vmem:[%s2 + $0x20] sm:$0xff]
        %v316 = vld [vmem:[%s2 + $0x28] sm:$0xff]
        %v317 = vld [vmem:[%s2 + $0x30] sm:$0xff]
        %v318 = vld [vmem:[%s2 + $0x38] sm:$0xff]
        %v319 = vld [vmem:[%s2 + $0x40] sm:$0xff]
        %v320 = vld [vmem:[%s2 + $0x48] sm:$0xff]
        %v321 = vld [vmem:[%s2 + $0x50] sm:$0xff]
        %v322 = vld [vmem:[%s2 + $0x58] sm:$0xff]
        %v323 = vld [vmem:[%s2 + $0x60] sm:$0xff]
        %v324 = vld [vmem:[%s2 + $0x68] sm:$0xff]
        %v325 = vld [vmem:[%s2 + $0x70] sm:$0xff]
        %v326 = vld [vmem:[%s2 + $0x78] sm:$0xff]
        %vm327 = vcmask 261120
        %v329 = vsel %vm327, %v294, 0
        %331 = vmatprep.subr.mxu0 0.0
        %332 = vmatpush1.msra.mxu0 %v311
        %333 = vmatprep.subr.mxu0 0.0
        %334 = vmatpush1.msra.mxu0 %v312
        %335 = vmatprep.subr.mxu0 0.0
        %336 = vmatpush1.msra.mxu0 %v313
        %337 = vmatprep.subr.mxu0 0.0
        %338 = vmatpush1.msra.mxu0 %v314
        %339 = vmatprep.subr.mxu0 0.0
        %340 = vmatpush1.msra.mxu0 0.0
        %341 = vmatprep.subr.mxu0 0.0
        %342 = vmatpush1.msra.mxu0 0.0
        %343 = vmatprep.subr.mxu0 0.0
        %344 = vmatpush1.msra.mxu0 0.0
        %345 = vmatprep.subr.mxu0 0.0
        %346 = vmatpush1.msra.mxu0 0.0
        %347 = vmatprep.subr.mxu0 0.0
        %348 = vmatpush1.msra.mxu0 0.0
        %349 = vmatprep.subr.mxu0 0.0
        %350 = vmatpush1.msra.mxu0 0.0
        %351 = vmatprep.subr.mxu0 0.0
        %352 = vmatpush1.msra.mxu0 0.0
        %353 = vmatprep.subr.mxu0 0.0
        %354 = vmatpush1.msra.mxu0 0.0
        %355 = vmatprep.subr.mxu0 0.0
        %356 = vmatpush1.msra.mxu0 0.0
        %357 = vmatprep.subr.mxu0 0.0
        %358 = vmatpush1.msra.mxu0 0.0
        %359 = vmatprep.subr.mxu0 0.0
        %360 = vmatpush1.msra.mxu0 0.0
        %361 = vmatprep.subr.mxu0 0.0
        %362 = vmatpush1.msra.mxu0 0.0
        %363 = vmatprep.subr.mxu0 0.0
        %364 = vmatpush1.msra.mxu0 0.0
        %365 = vmatprep.subr.mxu0 0.0
        %366 = vmatpush1.msra.mxu0 0.0
        %367 = vmatprep.subr.mxu0 0.0
        %368 = vmatpush1.msra.mxu0 0.0
        %369 = vmatprep.subr.mxu0 0.0
        %370 = vmatpush1.msra.mxu0 0.0
        %371 = vmatprep.subr.mxu0 0.0
        %372 = vmatpush1.msra.mxu0 0.0
        %373 = vmatprep.subr.mxu0 0.0
        %374 = vmatpush1.msra.mxu0 0.0
        %375 = vmatprep.subr.mxu0 0.0
        %376 = vmatpush1.msra.mxu0 0.0
        %377 = vmatprep.subr.mxu0 0.0
        %378 = vmatpush1.msra.mxu0 0.0
        %379 = vmatprep.subr.mxu0 0.0
        %380 = vmatpush1.msra.mxu0 0.0
        %381 = vmatprep.subr.mxu0 0.0
        %382 = vmatpush1.msra.mxu0 0.0
        %383 = vmatprep.subr.mxu0 0.0
        %384 = vmatpush1.msra.mxu0 0.0
        %385 = vmatprep.subr.mxu0 0.0
        %386 = vmatpush1.msra.mxu0 0.0
        %387 = vmatprep.subr.mxu0 0.0
        %388 = vmatpush1.msra.mxu0 0.0
        %389 = vmatprep.subr.mxu0 0.0
        %390 = vmatpush1.msra.mxu0 0.0
        %391 = vmatprep.subr.mxu0 0.0
        %392 = vmatpush1.msra.mxu0 0.0
        %393 = vmatprep.subr.mxu0 0.0
        %394 = vmatpush1.msra.mxu0 0.0
        %395 = vmatprep.mubr.f32.mxu0 0.0
        %396 = vmatmul.mubr.f32.gmra.mrb[0].mxu0 %v329
        %v397 = vpop.f32.mrb[0].mxu0
        %v398 = vadd.f32 0.0, %v397
        %v399 = vpop.f32.mrb[0].mxu0
        %400 = vdwg.mxu0
        %401 = vmatprep.subr.mxu0 0.0
        %402 = vmatpush1.msra.mxu0 %v315
        %403 = vmatprep.subr.mxu0 0.0
        %404 = vmatpush1.msra.mxu0 %v316
        %405 = vmatprep.subr.mxu0 0.0
        %406 = vmatpush1.msra.mxu0 %v317
        %407 = vmatprep.subr.mxu0 0.0
        %408 = vmatpush1.msra.mxu0 %v318
        %409 = vmatprep.subr.mxu0 0.0
        %410 = vmatpush1.msra.mxu0 0.0
        %411 = vmatprep.subr.mxu0 0.0
        %412 = vmatpush1.msra.mxu0 0.0
        %413 = vmatprep.subr.mxu0 0.0
        %414 = vmatpush1.msra.mxu0 0.0
        %415 = vmatprep.subr.mxu0 0.0
        %416 = vmatpush1.msra.mxu0 0.0
        %417 = vmatprep.subr.mxu0 0.0
        %418 = vmatpush1.msra.mxu0 0.0
        %419 = vmatprep.subr.mxu0 0.0
        %420 = vmatpush1.msra.mxu0 0.0
        %421 = vmatprep.subr.mxu0 0.0
        %422 = vmatpush1.msra.mxu0 0.0
        %423 = vmatprep.subr.mxu0 0.0
        %424 = vmatpush1.msra.mxu0 0.0
        %425 = vmatprep.subr.mxu0 0.0
        %426 = vmatpush1.msra.mxu0 0.0
        %427 = vmatprep.subr.mxu0 0.0
        %428 = vmatpush1.msra.mxu0 0.0
        %429 = vmatprep.subr.mxu0 0.0
        %430 = vmatpush1.msra.mxu0 0.0
        %431 = vmatprep.subr.mxu0 0.0
        %432 = vmatpush1.msra.mxu0 0.0
        %433 = vmatprep.subr.mxu0 0.0
        %434 = vmatpush1.msra.mxu0 0.0
        %435 = vmatprep.subr.mxu0 0.0
        %436 = vmatpush1.msra.mxu0 0.0
        %437 = vmatprep.subr.mxu0 0.0
        %438 = vmatpush1.msra.mxu0 0.0
        %439 = vmatprep.subr.mxu0 0.0
        %440 = vmatpush1.msra.mxu0 0.0
        %441 = vmatprep.subr.mxu0 0.0
        %442 = vmatpush1.msra.mxu0 0.0
        %443 = vmatprep.subr.mxu0 0.0
        %444 = vmatpush1.msra.mxu0 0.0
        %445 = vmatprep.subr.mxu0 0.0
        %446 = vmatpush1.msra.mxu0 0.0
        %447 = vmatprep.subr.mxu0 0.0
        %448 = vmatpush1.msra.mxu0 0.0
        %449 = vmatprep.subr.mxu0 0.0
        %450 = vmatpush1.msra.mxu0 0.0
        %451 = vmatprep.subr.mxu0 0.0
        %452 = vmatpush1.msra.mxu0 0.0
        %453 = vmatprep.subr.mxu0 0.0
        %454 = vmatpush1.msra.mxu0 0.0
        %455 = vmatprep.subr.mxu0 0.0
        %456 = vmatpush1.msra.mxu0 0.0
        %457 = vmatprep.subr.mxu0 0.0
        %458 = vmatpush1.msra.mxu0 0.0
        %459 = vmatprep.subr.mxu0 0.0
        %460 = vmatpush1.msra.mxu0 0.0
        %461 = vmatprep.subr.mxu0 0.0
        %462 = vmatpush1.msra.mxu0 0.0
        %463 = vmatprep.subr.mxu0 0.0
        %464 = vmatpush1.msra.mxu0 0.0
        %465 = vmatprep.mubr.f32.mxu0 0.0
        %466 = vmatmul.mubr.f32.gmra.mrb[0].mxu0 %v329
        %v467 = vpop.f32.mrb[0].mxu0
        %v468 = vadd.f32 0.0, %v467
        %v469 = vpop.f32.mrb[0].mxu0
        %470 = vdwg.mxu0
        %471 = vmatprep.subr.mxu0 0.0
        %472 = vmatpush1.msra.mxu0 %v319
        %473 = vmatprep.subr.mxu0 0.0
        %474 = vmatpush1.msra.mxu0 %v320
        %475 = vmatprep.subr.mxu0 0.0
        %476 = vmatpush1.msra.mxu0 %v321
        %477 = vmatprep.subr.mxu0 0.0
        %478 = vmatpush1.msra.mxu0 %v322
        %479 = vmatprep.subr.mxu0 0.0
        %480 = vmatpush1.msra.mxu0 0.0
        %481 = vmatprep.subr.mxu0 0.0
        %482 = vmatpush1.msra.mxu0 0.0
        %483 = vmatprep.subr.mxu0 0.0
        %484 = vmatpush1.msra.mxu0 0.0
        %485 = vmatprep.subr.mxu0 0.0
        %486 = vmatpush1.msra.mxu0 0.0
        %487 = vmatprep.subr.mxu0 0.0
        %488 = vmatpush1.msra.mxu0 0.0
        %489 = vmatprep.subr.mxu0 0.0
        %490 = vmatpush1.msra.mxu0 0.0
        %491 = vmatprep.subr.mxu0 0.0
        %492 = vmatpush1.msra.mxu0 0.0
        %493 = vmatprep.subr.mxu0 0.0
        %494 = vmatpush1.msra.mxu0 0.0
        %495 = vmatprep.subr.mxu0 0.0
        %496 = vmatpush1.msra.mxu0 0.0
        %497 = vmatprep.subr.mxu0 0.0
        %498 = vmatpush1.msra.mxu0 0.0
        %499 = vmatprep.subr.mxu0 0.0
        %500 = vmatpush1.msra.mxu0 0.0
        %501 = vmatprep.subr.mxu0 0.0
        %502 = vmatpush1.msra.mxu0 0.0
        %503 = vmatprep.subr.mxu0 0.0
        %504 = vmatpush1.msra.mxu0 0.0
        %505 = vmatprep.subr.mxu0 0.0
        %506 = vmatpush1.msra.mxu0 0.0
        %507 = vmatprep.subr.mxu0 0.0
        %508 = vmatpush1.msra.mxu0 0.0
        %509 = vmatprep.subr.mxu0 0.0
        %510 = vmatpush1.msra.mxu0 0.0
        %511 = vmatprep.subr.mxu0 0.0
        %512 = vmatpush1.msra.mxu0 0.0
        %513 = vmatprep.subr.mxu0 0.0
        %514 = vmatpush1.msra.mxu0 0.0
        %515 = vmatprep.subr.mxu0 0.0
        %516 = vmatpush1.msra.mxu0 0.0
        %517 = vmatprep.subr.mxu0 0.0
        %518 = vmatpush1.msra.mxu0 0.0
        %519 = vmatprep.subr.mxu0 0.0
        %520 = vmatpush1.msra.mxu0 0.0
        %521 = vmatprep.subr.mxu0 0.0
        %522 = vmatpush1.msra.mxu0 0.0
        %523 = vmatprep.subr.mxu0 0.0
        %524 = vmatpush1.msra.mxu0 0.0
        %525 = vmatprep.subr.mxu0 0.0
        %526 = vmatpush1.msra.mxu0 0.0
        %527 = vmatprep.subr.mxu0 0.0
        %528 = vmatpush1.msra.mxu0 0.0
        %529 = vmatprep.subr.mxu0 0.0
        %530 = vmatpush1.msra.mxu0 0.0
        %531 = vmatprep.subr.mxu0 0.0
        %532 = vmatpush1.msra.mxu0 0.0
        %533 = vmatprep.subr.mxu0 0.0
        %534 = vmatpush1.msra.mxu0 0.0
        %535 = vmatprep.mubr.f32.mxu0 0.0
        %536 = vmatmul.mubr.f32.gmra.mrb[0].mxu0 %v329
        %v537 = vpop.f32.mrb[0].mxu0
        %v538 = vadd.f32 0.0, %v537
        %v539 = vpop.f32.mrb[0].mxu0
        %540 = vdwg.mxu0
        %541 = vmatprep.subr.mxu0 0.0
        %542 = vmatpush1.msra.mxu0 %v323
        %543 = vmatprep.subr.mxu0 0.0
        %544 = vmatpush1.msra.mxu0 %v324
        %545 = vmatprep.subr.mxu0 0.0
        %546 = vmatpush1.msra.mxu0 %v325
        %547 = vmatprep.subr.mxu0 0.0
        %548 = vmatpush1.msra.mxu0 %v326
        %549 = vmatprep.subr.mxu0 0.0
        %550 = vmatpush1.msra.mxu0 0.0
        %551 = vmatprep.subr.mxu0 0.0
        %552 = vmatpush1.msra.mxu0 0.0
        %553 = vmatprep.subr.mxu0 0.0
        %554 = vmatpush1.msra.mxu0 0.0
        %555 = vmatprep.subr.mxu0 0.0
        %556 = vmatpush1.msra.mxu0 0.0
        %557 = vmatprep.subr.mxu0 0.0
        %558 = vmatpush1.msra.mxu0 0.0
        %559 = vmatprep.subr.mxu0 0.0
        %560 = vmatpush1.msra.mxu0 0.0
        %561 = vmatprep.subr.mxu0 0.0
        %562 = vmatpush1.msra.mxu0 0.0
        %563 = vmatprep.subr.mxu0 0.0
        %564 = vmatpush1.msra.mxu0 0.0
        %565 = vmatprep.subr.mxu0 0.0
        %566 = vmatpush1.msra.mxu0 0.0
        %567 = vmatprep.subr.mxu0 0.0
        %568 = vmatpush1.msra.mxu0 0.0
        %569 = vmatprep.subr.mxu0 0.0
        %570 = vmatpush1.msra.mxu0 0.0
        %571 = vmatprep.subr.mxu0 0.0
        %572 = vmatpush1.msra.mxu0 0.0
        %573 = vmatprep.subr.mxu0 0.0
        %574 = vmatpush1.msra.mxu0 0.0
        %575 = vmatprep.subr.mxu0 0.0
        %576 = vmatpush1.msra.mxu0 0.0
        %577 = vmatprep.subr.mxu0 0.0
        %578 = vmatpush1.msra.mxu0 0.0
        %579 = vmatprep.subr.mxu0 0.0
        %580 = vmatpush1.msra.mxu0 0.0
        %581 = vmatprep.subr.mxu0 0.0
        %582 = vmatpush1.msra.mxu0 0.0
        %583 = vmatprep.subr.mxu0 0.0
        %584 = vmatpush1.msra.mxu0 0.0
        %585 = vmatprep.subr.mxu0 0.0
        %586 = vmatpush1.msra.mxu0 0.0
        %587 = vmatprep.subr.mxu0 0.0
        %588 = vmatpush1.msra.mxu0 0.0
        %589 = vmatprep.subr.mxu0 0.0
        %590 = vmatpush1.msra.mxu0 0.0
        %591 = vmatprep.subr.mxu0 0.0
        %592 = vmatpush1.msra.mxu0 0.0
        %593 = vmatprep.subr.mxu0 0.0
        %594 = vmatpush1.msra.mxu0 0.0
        %595 = vmatprep.subr.mxu0 0.0
        %596 = vmatpush1.msra.mxu0 0.0
        %597 = vmatprep.subr.mxu0 0.0
        %598 = vmatpush1.msra.mxu0 0.0
        %599 = vmatprep.subr.mxu0 0.0
        %600 = vmatpush1.msra.mxu0 0.0
        %601 = vmatprep.subr.mxu0 0.0
        %602 = vmatpush1.msra.mxu0 0.0
        %603 = vmatprep.subr.mxu0 0.0
        %604 = vmatpush1.msra.mxu0 0.0
        %605 = vmatprep.mubr.f32.mxu0 0.0
        %606 = vmatmul.mubr.f32.gmra.mrb[0].mxu0 %v329
        %v607 = vpop.f32.mrb[0].mxu0
        %v608 = vadd.f32 0.0, %v607
        %v609 = vpop.f32.mrb[0].mxu0
        %610 = vdwg.mxu0
        %v611 = vld [vmem:[%s3] sm:$0xff]
        %v612 = vld [vmem:[%s3 + $0x8] sm:$0xff]
        %v613 = vld [vmem:[%s3 + $0x10] sm:$0xff]
        %v614 = vld [vmem:[%s3 + $0x18] sm:$0xff]
        %v615 = vld [vmem:[%s3 + $0x20] sm:$0xff]
        %v616 = vld [vmem:[%s3 + $0x28] sm:$0xff]
        %v617 = vld [vmem:[%s3 + $0x30] sm:$0xff]
        %v618 = vld [vmem:[%s3 + $0x38] sm:$0xff]
        %v619 = vld [vmem:[%s3 + $0x40] sm:$0xff]
        %v620 = vld [vmem:[%s3 + $0x48] sm:$0xff]
        %v621 = vld [vmem:[%s3 + $0x50] sm:$0xff]
        %v622 = vld [vmem:[%s3 + $0x58] sm:$0xff]
        %v623 = vld [vmem:[%s3 + $0x60] sm:$0xff]
        %v624 = vld [vmem:[%s3 + $0x68] sm:$0xff]
        %v625 = vld [vmem:[%s3 + $0x70] sm:$0xff]
        %v626 = vld [vmem:[%s3 + $0x78] sm:$0xff]
        %v627 = vld [vmem:[%s4] sm:$0x1]
        %v628 = vld [vmem:[%s4 + $0x1] sm:$0x1]
        %v629 = vld [vmem:[%s4 + $0x2] sm:$0x1]
        %v630 = vld [vmem:[%s4 + $0x3] sm:$0x1]
        %v635 = vlaneseq
        %v636 = vshrl.u32 %v635, 7
        %v637 = vsub.s32 0, %v636
        %v638 = vrot.slane %v627, %v637
        %v639 = vlaneseq
        %v640 = vshrl.u32 %v639, 7
        %v641 = vsub.s32 0, %v640
        %v642 = vrot.slane %v628, %v641
        %v643 = vlaneseq
        %v644 = vshrl.u32 %v643, 7
        %v645 = vsub.s32 0, %v644
        %v646 = vrot.slane %v629, %v645
        %v647 = vlaneseq
        %v648 = vshrl.u32 %v647, 7
        %v649 = vsub.s32 0, %v648
        %v650 = vrot.slane %v630, %v649
        %655 = vmatprep.subr.mxu0 0.0
        %656 = vmatpush1.msra.mxu0 %v295
        %657 = vmatprep.subr.mxu0 0.0
        %658 = vmatpush1.msra.mxu0 %v296
        %659 = vmatprep.subr.mxu0 0.0
        %660 = vmatpush1.msra.mxu0 %v297
        %661 = vmatprep.subr.mxu0 0.0
        %662 = vmatpush1.msra.mxu0 %v298
        %663 = vmatprep.subr.mxu0 0.0
        %664 = vmatpush1.msra.mxu0 0.0
        %665 = vmatprep.subr.mxu0 0.0
        %666 = vmatpush1.msra.mxu0 0.0
        %667 = vmatprep.subr.mxu0 0.0
        %668 = vmatpush1.msra.mxu0 0.0
        %669 = vmatprep.subr.mxu0 0.0
        %670 = vmatpush1.msra.mxu0 0.0
        %671 = vmatprep.subr.mxu0 0.0
        %672 = vmatpush1.msra.mxu0 0.0
        %673 = vmatprep.subr.mxu0 0.0
        %674 = vmatpush1.msra.mxu0 0.0
        %675 = vmatprep.subr.mxu0 0.0
        %676 = vmatpush1.msra.mxu0 0.0
        %677 = vmatprep.subr.mxu0 0.0
        %678 = vmatpush1.msra.mxu0 0.0
        %679 = vmatprep.subr.mxu0 0.0
        %680 = vmatpush1.msra.mxu0 0.0
        %681 = vmatprep.subr.mxu0 0.0
        %682 = vmatpush1.msra.mxu0 0.0
        %683 = vmatprep.subr.mxu0 0.0
        %684 = vmatpush1.msra.mxu0 0.0
        %685 = vmatprep.subr.mxu0 0.0
        %686 = vmatpush1.msra.mxu0 0.0
        %687 = vmatprep.subr.mxu0 0.0
        %688 = vmatpush1.msra.mxu0 0.0
        %689 = vmatprep.subr.mxu0 0.0
        %690 = vmatpush1.msra.mxu0 0.0
        %691 = vmatprep.subr.mxu0 0.0
        %692 = vmatpush1.msra.mxu0 0.0
        %693 = vmatprep.subr.mxu0 0.0
        %694 = vmatpush1.msra.mxu0 0.0
        %695 = vmatprep.subr.mxu0 0.0
        %696 = vmatpush1.msra.mxu0 0.0
        %697 = vmatprep.subr.mxu0 0.0
        %698 = vmatpush1.msra.mxu0 0.0
        %699 = vmatprep.subr.mxu0 0.0
        %700 = vmatpush1.msra.mxu0 0.0
        %701 = vmatprep.subr.mxu0 0.0
        %702 = vmatpush1.msra.mxu0 0.0
        %703 = vmatprep.subr.mxu0 0.0
        %704 = vmatpush1.msra.mxu0 0.0
        %705 = vmatprep.subr.mxu0 0.0
        %706 = vmatpush1.msra.mxu0 0.0
        %707 = vmatprep.subr.mxu0 0.0
        %708 = vmatpush1.msra.mxu0 0.0
        %709 = vmatprep.subr.mxu0 0.0
        %710 = vmatpush1.msra.mxu0 0.0
        %711 = vmatprep.subr.mxu0 0.0
        %712 = vmatpush1.msra.mxu0 0.0
        %713 = vmatprep.subr.mxu0 0.0
        %714 = vmatpush1.msra.mxu0 0.0
        %715 = vmatprep.subr.mxu0 0.0
        %716 = vmatpush1.msra.mxu0 0.0
        %717 = vmatprep.subr.mxu0 0.0
        %718 = vmatpush1.msra.mxu0 0.0
        %719 = vmatprep.mubr.f32.mxu0 0.0
        %720 = vmatmul.mubr.f32.gmra.mrb[0].mxu0 %v329
        %v721 = vpop.f32.mrb[0].mxu0
        %v722 = vadd.f32 %v638, %v721
        %v723 = vpop.f32.mrb[0].mxu0
        %724 = vdwg.mxu0
        %725 = vmatprep.subr.mxu0 0.0
        %726 = vmatpush1.msra.mxu0 %v299
        %727 = vmatprep.subr.mxu0 0.0
        %728 = vmatpush1.msra.mxu0 %v300
        %729 = vmatprep.subr.mxu0 0.0
        %730 = vmatpush1.msra.mxu0 %v301
        %731 = vmatprep.subr.mxu0 0.0
        %732 = vmatpush1.msra.mxu0 %v302
        %733 = vmatprep.subr.mxu0 0.0
        %734 = vmatpush1.msra.mxu0 0.0
        %735 = vmatprep.subr.mxu0 0.0
        %736 = vmatpush1.msra.mxu0 0.0
        %737 = vmatprep.subr.mxu0 0.0
        %738 = vmatpush1.msra.mxu0 0.0
        %739 = vmatprep.subr.mxu0 0.0
        %740 = vmatpush1.msra.mxu0 0.0
        %741 = vmatprep.subr.mxu0 0.0
        %742 = vmatpush1.msra.mxu0 0.0
        %743 = vmatprep.subr.mxu0 0.0
        %744 = vmatpush1.msra.mxu0 0.0
        %745 = vmatprep.subr.mxu0 0.0
        %746 = vmatpush1.msra.mxu0 0.0
        %747 = vmatprep.subr.mxu0 0.0
        %748 = vmatpush1.msra.mxu0 0.0
        %749 = vmatprep.subr.mxu0 0.0
        %750 = vmatpush1.msra.mxu0 0.0
        %751 = vmatprep.subr.mxu0 0.0
        %752 = vmatpush1.msra.mxu0 0.0
        %753 = vmatprep.subr.mxu0 0.0
        %754 = vmatpush1.msra.mxu0 0.0
        %755 = vmatprep.subr.mxu0 0.0
        %756 = vmatpush1.msra.mxu0 0.0
        %757 = vmatprep.subr.mxu0 0.0
        %758 = vmatpush1.msra.mxu0 0.0
        %759 = vmatprep.subr.mxu0 0.0
        %760 = vmatpush1.msra.mxu0 0.0
        %761 = vmatprep.subr.mxu0 0.0
        %762 = vmatpush1.msra.mxu0 0.0
        %763 = vmatprep.subr.mxu0 0.0
        %764 = vmatpush1.msra.mxu0 0.0
        %765 = vmatprep.subr.mxu0 0.0
        %766 = vmatpush1.msra.mxu0 0.0
        %767 = vmatprep.subr.mxu0 0.0
        %768 = vmatpush1.msra.mxu0 0.0
        %769 = vmatprep.subr.mxu0 0.0
        %770 = vmatpush1.msra.mxu0 0.0
        %771 = vmatprep.subr.mxu0 0.0
        %772 = vmatpush1.msra.mxu0 0.0
        %773 = vmatprep.subr.mxu0 0.0
        %774 = vmatpush1.msra.mxu0 0.0
        %775 = vmatprep.subr.mxu0 0.0
        %776 = vmatpush1.msra.mxu0 0.0
        %777 = vmatprep.subr.mxu0 0.0
        %778 = vmatpush1.msra.mxu0 0.0
        %779 = vmatprep.subr.mxu0 0.0
        %780 = vmatpush1.msra.mxu0 0.0
        %781 = vmatprep.subr.mxu0 0.0
        %782 = vmatpush1.msra.mxu0 0.0
        %783 = vmatprep.subr.mxu0 0.0
        %784 = vmatpush1.msra.mxu0 0.0
        %785 = vmatprep.subr.mxu0 0.0
        %786 = vmatpush1.msra.mxu0 0.0
        %787 = vmatprep.subr.mxu0 0.0
        %788 = vmatpush1.msra.mxu0 0.0
        %789 = vmatprep.mubr.f32.mxu0 0.0
        %790 = vmatmul.mubr.f32.gmra.mrb[0].mxu0 %v329
        %v791 = vpop.f32.mrb[0].mxu0
        %v792 = vadd.f32 %v642, %v791
        %v793 = vpop.f32.mrb[0].mxu0
        %794 = vdwg.mxu0
        %795 = vmatprep.subr.mxu0 0.0
        %796 = vmatpush1.msra.mxu0 %v303
        %797 = vmatprep.subr.mxu0 0.0
        %798 = vmatpush1.msra.mxu0 %v304
        %799 = vmatprep.subr.mxu0 0.0
        %800 = vmatpush1.msra.mxu0 %v305
        %801 = vmatprep.subr.mxu0 0.0
        %802 = vmatpush1.msra.mxu0 %v306
        %803 = vmatprep.subr.mxu0 0.0
        %804 = vmatpush1.msra.mxu0 0.0
        %805 = vmatprep.subr.mxu0 0.0
        %806 = vmatpush1.msra.mxu0 0.0
        %807 = vmatprep.subr.mxu0 0.0
        %808 = vmatpush1.msra.mxu0 0.0
        %809 = vmatprep.subr.mxu0 0.0
        %810 = vmatpush1.msra.mxu0 0.0
        %811 = vmatprep.subr.mxu0 0.0
        %812 = vmatpush1.msra.mxu0 0.0
        %813 = vmatprep.subr.mxu0 0.0
        %814 = vmatpush1.msra.mxu0 0.0
        %815 = vmatprep.subr.mxu0 0.0
        %816 = vmatpush1.msra.mxu0 0.0
        %817 = vmatprep.subr.mxu0 0.0
        %818 = vmatpush1.msra.mxu0 0.0
        %819 = vmatprep.subr.mxu0 0.0
        %820 = vmatpush1.msra.mxu0 0.0
        %821 = vmatprep.subr.mxu0 0.0
        %822 = vmatpush1.msra.mxu0 0.0
        %823 = vmatprep.subr.mxu0 0.0
        %824 = vmatpush1.msra.mxu0 0.0
        %825 = vmatprep.subr.mxu0 0.0
        %826 = vmatpush1.msra.mxu0 0.0
        %827 = vmatprep.subr.mxu0 0.0
        %828 = vmatpush1.msra.mxu0 0.0
        %829 = vmatprep.subr.mxu0 0.0
        %830 = vmatpush1.msra.mxu0 0.0
        %831 = vmatprep.subr.mxu0 0.0
        %832 = vmatpush1.msra.mxu0 0.0
        %833 = vmatprep.subr.mxu0 0.0
        %834 = vmatpush1.msra.mxu0 0.0
        %835 = vmatprep.subr.mxu0 0.0
        %836 = vmatpush1.msra.mxu0 0.0
        %837 = vmatprep.subr.mxu0 0.0
        %838 = vmatpush1.msra.mxu0 0.0
        %839 = vmatprep.subr.mxu0 0.0
        %840 = vmatpush1.msra.mxu0 0.0
        %841 = vmatprep.subr.mxu0 0.0
        %842 = vmatpush1.msra.mxu0 0.0
        %843 = vmatprep.subr.mxu0 0.0
        %844 = vmatpush1.msra.mxu0 0.0
        %845 = vmatprep.subr.mxu0 0.0
        %846 = vmatpush1.msra.mxu0 0.0
        %847 = vmatprep.subr.mxu0 0.0
        %848 = vmatpush1.msra.mxu0 0.0
        %849 = vmatprep.subr.mxu0 0.0
        %850 = vmatpush1.msra.mxu0 0.0
        %851 = vmatprep.subr.mxu0 0.0
        %852 = vmatpush1.msra.mxu0 0.0
        %853 = vmatprep.subr.mxu0 0.0
        %854 = vmatpush1.msra.mxu0 0.0
        %855 = vmatprep.subr.mxu0 0.0
        %856 = vmatpush1.msra.mxu0 0.0
        %857 = vmatprep.subr.mxu0 0.0
        %858 = vmatpush1.msra.mxu0 0.0
        %859 = vmatprep.mubr.f32.mxu0 0.0
        %860 = vmatmul.mubr.f32.gmra.mrb[0].mxu0 %v329
        %v861 = vpop.f32.mrb[0].mxu0
        %v862 = vadd.f32 %v646, %v861
        %v863 = vpop.f32.mrb[0].mxu0
        %864 = vdwg.mxu0
        %865 = vmatprep.subr.mxu0 0.0
        %866 = vmatpush1.msra.mxu0 %v307
        %867 = vmatprep.subr.mxu0 0.0
        %868 = vmatpush1.msra.mxu0 %v308
        %869 = vmatprep.subr.mxu0 0.0
        %870 = vmatpush1.msra.mxu0 %v309
        %871 = vmatprep.subr.mxu0 0.0
        %872 = vmatpush1.msra.mxu0 %v310
        %873 = vmatprep.subr.mxu0 0.0
        %874 = vmatpush1.msra.mxu0 0.0
        %875 = vmatprep.subr.mxu0 0.0
        %876 = vmatpush1.msra.mxu0 0.0
        %877 = vmatprep.subr.mxu0 0.0
        %878 = vmatpush1.msra.mxu0 0.0
        %879 = vmatprep.subr.mxu0 0.0
        %880 = vmatpush1.msra.mxu0 0.0
        %881 = vmatprep.subr.mxu0 0.0
        %882 = vmatpush1.msra.mxu0 0.0
        %883 = vmatprep.subr.mxu0 0.0
        %884 = vmatpush1.msra.mxu0 0.0
        %885 = vmatprep.subr.mxu0 0.0
        %886 = vmatpush1.msra.mxu0 0.0
        %887 = vmatprep.subr.mxu0 0.0
        %888 = vmatpush1.msra.mxu0 0.0
        %889 = vmatprep.subr.mxu0 0.0
        %890 = vmatpush1.msra.mxu0 0.0
        %891 = vmatprep.subr.mxu0 0.0
        %892 = vmatpush1.msra.mxu0 0.0
        %893 = vmatprep.subr.mxu0 0.0
        %894 = vmatpush1.msra.mxu0 0.0
        %895 = vmatprep.subr.mxu0 0.0
        %896 = vmatpush1.msra.mxu0 0.0
        %897 = vmatprep.subr.mxu0 0.0
        %898 = vmatpush1.msra.mxu0 0.0
        %899 = vmatprep.subr.mxu0 0.0
        %900 = vmatpush1.msra.mxu0 0.0
        %901 = vmatprep.subr.mxu0 0.0
        %902 = vmatpush1.msra.mxu0 0.0
        %903 = vmatprep.subr.mxu0 0.0
        %904 = vmatpush1.msra.mxu0 0.0
        %905 = vmatprep.subr.mxu0 0.0
        %906 = vmatpush1.msra.mxu0 0.0
        %907 = vmatprep.subr.mxu0 0.0
        %908 = vmatpush1.msra.mxu0 0.0
        %909 = vmatprep.subr.mxu0 0.0
        %910 = vmatpush1.msra.mxu0 0.0
        %911 = vmatprep.subr.mxu0 0.0
        %912 = vmatpush1.msra.mxu0 0.0
        %913 = vmatprep.subr.mxu0 0.0
        %914 = vmatpush1.msra.mxu0 0.0
        %915 = vmatprep.subr.mxu0 0.0
        %916 = vmatpush1.msra.mxu0 0.0
        %917 = vmatprep.subr.mxu0 0.0
        %918 = vmatpush1.msra.mxu0 0.0
        %919 = vmatprep.subr.mxu0 0.0
        %920 = vmatpush1.msra.mxu0 0.0
        %921 = vmatprep.subr.mxu0 0.0
        %922 = vmatpush1.msra.mxu0 0.0
        %923 = vmatprep.subr.mxu0 0.0
        %924 = vmatpush1.msra.mxu0 0.0
        %925 = vmatprep.subr.mxu0 0.0
        %926 = vmatpush1.msra.mxu0 0.0
        %927 = vmatprep.subr.mxu0 0.0
        %928 = vmatpush1.msra.mxu0 0.0
        %929 = vmatprep.mubr.f32.mxu0 0.0
        %930 = vmatmul.mubr.f32.gmra.mrb[0].mxu0 %v329
        %v931 = vpop.f32.mrb[0].mxu0
        %v932 = vadd.f32 %v650, %v931
        %v933 = vpop.f32.mrb[0].mxu0
        %934 = vdwg.mxu0
        %v935 = vmul.f32 %v722, 0.35355338
        %v936 = vmul.f32 %v792, 0.35355338
        %v937 = vmul.f32 %v862, 0.35355338
        %v938 = vmul.f32 %v932, 0.35355338
        %v939 = vld [vmem:[%s5] sm:$0x1]
        %v940 = vld [vmem:[%s5 + $0x1] sm:$0x1]
        %v941 = vld [vmem:[%s5 + $0x2] sm:$0x1]
        %v942 = vld [vmem:[%s5 + $0x3] sm:$0x1]
        %v947 = vlaneseq
        %v948 = vshrl.u32 %v947, 7
        %v949 = vsub.s32 0, %v948
        %v950 = vrot.slane %v939, %v949
        %v951 = vlaneseq
        %v952 = vshrl.u32 %v951, 7
        %v953 = vsub.s32 0, %v952
        %v954 = vrot.slane %v940, %v953
        %v955 = vlaneseq
        %v956 = vshrl.u32 %v955, 7
        %v957 = vsub.s32 0, %v956
        %v958 = vrot.slane %v941, %v957
        %v959 = vlaneseq
        %v960 = vshrl.u32 %v959, 7
        %v961 = vsub.s32 0, %v960
        %v962 = vrot.slane %v942, %v961
        %967 = vmatprep.subr.mxu0 0.0
        %968 = vmatpush1.msra.mxu0 %v611
        %969 = vmatprep.subr.mxu0 0.0
        %970 = vmatpush1.msra.mxu0 %v612
        %971 = vmatprep.subr.mxu0 0.0
        %972 = vmatpush1.msra.mxu0 %v613
        %973 = vmatprep.subr.mxu0 0.0
        %974 = vmatpush1.msra.mxu0 %v614
        %975 = vmatprep.subr.mxu0 0.0
        %976 = vmatpush1.msra.mxu0 0.0
        %977 = vmatprep.subr.mxu0 0.0
        %978 = vmatpush1.msra.mxu0 0.0
        %979 = vmatprep.subr.mxu0 0.0
        %980 = vmatpush1.msra.mxu0 0.0
        %981 = vmatprep.subr.mxu0 0.0
        %982 = vmatpush1.msra.mxu0 0.0
        %983 = vmatprep.subr.mxu0 0.0
        %984 = vmatpush1.msra.mxu0 0.0
        %985 = vmatprep.subr.mxu0 0.0
        %986 = vmatpush1.msra.mxu0 0.0
        %987 = vmatprep.subr.mxu0 0.0
        %988 = vmatpush1.msra.mxu0 0.0
        %989 = vmatprep.subr.mxu0 0.0
        %990 = vmatpush1.msra.mxu0 0.0
        %991 = vmatprep.subr.mxu0 0.0
        %992 = vmatpush1.msra.mxu0 0.0
        %993 = vmatprep.subr.mxu0 0.0
        %994 = vmatpush1.msra.mxu0 0.0
        %995 = vmatprep.subr.mxu0 0.0
        %996 = vmatpush1.msra.mxu0 0.0
        %997 = vmatprep.subr.mxu0 0.0
        %998 = vmatpush1.msra.mxu0 0.0
        %999 = vmatprep.subr.mxu0 0.0
        %1000 = vmatpush1.msra.mxu0 0.0
        %1001 = vmatprep.subr.mxu0 0.0
        %1002 = vmatpush1.msra.mxu0 0.0
        %1003 = vmatprep.subr.mxu0 0.0
        %1004 = vmatpush1.msra.mxu0 0.0
        %1005 = vmatprep.subr.mxu0 0.0
        %1006 = vmatpush1.msra.mxu0 0.0
        %1007 = vmatprep.subr.mxu0 0.0
        %1008 = vmatpush1.msra.mxu0 0.0
        %1009 = vmatprep.subr.mxu0 0.0
        %1010 = vmatpush1.msra.mxu0 0.0
        %1011 = vmatprep.subr.mxu0 0.0
        %1012 = vmatpush1.msra.mxu0 0.0
        %1013 = vmatprep.subr.mxu0 0.0
        %1014 = vmatpush1.msra.mxu0 0.0
        %1015 = vmatprep.subr.mxu0 0.0
        %1016 = vmatpush1.msra.mxu0 0.0
        %1017 = vmatprep.subr.mxu0 0.0
        %1018 = vmatpush1.msra.mxu0 0.0
        %1019 = vmatprep.subr.mxu0 0.0
        %1020 = vmatpush1.msra.mxu0 0.0
        %1021 = vmatprep.subr.mxu0 0.0
        %1022 = vmatpush1.msra.mxu0 0.0
        %1023 = vmatprep.subr.mxu0 0.0
        %1024 = vmatpush1.msra.mxu0 0.0
        %1025 = vmatprep.subr.mxu0 0.0
        %1026 = vmatpush1.msra.mxu0 0.0
        %1027 = vmatprep.subr.mxu0 0.0
        %1028 = vmatpush1.msra.mxu0 0.0
        %1029 = vmatprep.subr.mxu0 0.0
        %1030 = vmatpush1.msra.mxu0 0.0
        %1031 = vmatprep.mubr.f32.mxu0 0.0
        %1032 = vmatmul.mubr.f32.gmra.mrb[0].mxu0 %v329
        %v1033 = vpop.f32.mrb[0].mxu0
        %v1034 = vadd.f32 %v950, %v1033
        %v1035 = vpop.f32.mrb[0].mxu0
        %1036 = vdwg.mxu0
        %1037 = vmatprep.subr.mxu0 0.0
        %1038 = vmatpush1.msra.mxu0 %v615
        %1039 = vmatprep.subr.mxu0 0.0
        %1040 = vmatpush1.msra.mxu0 %v616
        %1041 = vmatprep.subr.mxu0 0.0
        %1042 = vmatpush1.msra.mxu0 %v617
        %1043 = vmatprep.subr.mxu0 0.0
        %1044 = vmatpush1.msra.mxu0 %v618
        %1045 = vmatprep.subr.mxu0 0.0
        %1046 = vmatpush1.msra.mxu0 0.0
        %1047 = vmatprep.subr.mxu0 0.0
        %1048 = vmatpush1.msra.mxu0 0.0
        %1049 = vmatprep.subr.mxu0 0.0
        %1050 = vmatpush1.msra.mxu0 0.0
        %1051 = vmatprep.subr.mxu0 0.0
        %1052 = vmatpush1.msra.mxu0 0.0
        %1053 = vmatprep.subr.mxu0 0.0
        %1054 = vmatpush1.msra.mxu0 0.0
        %1055 = vmatprep.subr.mxu0 0.0
        %1056 = vmatpush1.msra.mxu0 0.0
        %1057 = vmatprep.subr.mxu0 0.0
        %1058 = vmatpush1.msra.mxu0 0.0
        %1059 = vmatprep.subr.mxu0 0.0
        %1060 = vmatpush1.msra.mxu0 0.0
        %1061 = vmatprep.subr.mxu0 0.0
        %1062 = vmatpush1.msra.mxu0 0.0
        %1063 = vmatprep.subr.mxu0 0.0
        %1064 = vmatpush1.msra.mxu0 0.0
        %1065 = vmatprep.subr.mxu0 0.0
        %1066 = vmatpush1.msra.mxu0 0.0
        %1067 = vmatprep.subr.mxu0 0.0
        %1068 = vmatpush1.msra.mxu0 0.0
        %1069 = vmatprep.subr.mxu0 0.0
        %1070 = vmatpush1.msra.mxu0 0.0
        %1071 = vmatprep.subr.mxu0 0.0
        %1072 = vmatpush1.msra.mxu0 0.0
        %1073 = vmatprep.subr.mxu0 0.0
        %1074 = vmatpush1.msra.mxu0 0.0
        %1075 = vmatprep.subr.mxu0 0.0
        %1076 = vmatpush1.msra.mxu0 0.0
        %1077 = vmatprep.subr.mxu0 0.0
        %1078 = vmatpush1.msra.mxu0 0.0
        %1079 = vmatprep.subr.mxu0 0.0
        %1080 = vmatpush1.msra.mxu0 0.0
        %1081 = vmatprep.subr.mxu0 0.0
        %1082 = vmatpush1.msra.mxu0 0.0
        %1083 = vmatprep.subr.mxu0 0.0
        %1084 = vmatpush1.msra.mxu0 0.0
        %1085 = vmatprep.subr.mxu0 0.0
        %1086 = vmatpush1.msra.mxu0 0.0
        %1087 = vmatprep.subr.mxu0 0.0
        %1088 = vmatpush1.msra.mxu0 0.0
        %1089 = vmatprep.subr.mxu0 0.0
        %1090 = vmatpush1.msra.mxu0 0.0
        %1091 = vmatprep.subr.mxu0 0.0
        %1092 = vmatpush1.msra.mxu0 0.0
        %1093 = vmatprep.subr.mxu0 0.0
        %1094 = vmatpush1.msra.mxu0 0.0
        %1095 = vmatprep.subr.mxu0 0.0
        %1096 = vmatpush1.msra.mxu0 0.0
        %1097 = vmatprep.subr.mxu0 0.0
        %1098 = vmatpush1.msra.mxu0 0.0
        %1099 = vmatprep.subr.mxu0 0.0
        %1100 = vmatpush1.msra.mxu0 0.0
        %1101 = vmatprep.mubr.f32.mxu0 0.0
        %1102 = vmatmul.mubr.f32.gmra.mrb[0].mxu0 %v329
        %v1103 = vpop.f32.mrb[0].mxu0
        %v1104 = vadd.f32 %v954, %v1103
        %v1105 = vpop.f32.mrb[0].mxu0
        %1106 = vdwg.mxu0
        %1107 = vmatprep.subr.mxu0 0.0
        %1108 = vmatpush1.msra.mxu0 %v619
        %1109 = vmatprep.subr.mxu0 0.0
        %1110 = vmatpush1.msra.mxu0 %v620
        %1111 = vmatprep.subr.mxu0 0.0
        %1112 = vmatpush1.msra.mxu0 %v621
        %1113 = vmatprep.subr.mxu0 0.0
        %1114 = vmatpush1.msra.mxu0 %v622
        %1115 = vmatprep.subr.mxu0 0.0
        %1116 = vmatpush1.msra.mxu0 0.0
        %1117 = vmatprep.subr.mxu0 0.0
        %1118 = vmatpush1.msra.mxu0 0.0
        %1119 = vmatprep.subr.mxu0 0.0
        %1120 = vmatpush1.msra.mxu0 0.0
        %1121 = vmatprep.subr.mxu0 0.0
        %1122 = vmatpush1.msra.mxu0 0.0
        %1123 = vmatprep.subr.mxu0 0.0
        %1124 = vmatpush1.msra.mxu0 0.0
        %1125 = vmatprep.subr.mxu0 0.0
        %1126 = vmatpush1.msra.mxu0 0.0
        %1127 = vmatprep.subr.mxu0 0.0
        %1128 = vmatpush1.msra.mxu0 0.0
        %1129 = vmatprep.subr.mxu0 0.0
        %1130 = vmatpush1.msra.mxu0 0.0
        %1131 = vmatprep.subr.mxu0 0.0
        %1132 = vmatpush1.msra.mxu0 0.0
        %1133 = vmatprep.subr.mxu0 0.0
        %1134 = vmatpush1.msra.mxu0 0.0
        %1135 = vmatprep.subr.mxu0 0.0
        %1136 = vmatpush1.msra.mxu0 0.0
        %1137 = vmatprep.subr.mxu0 0.0
        %1138 = vmatpush1.msra.mxu0 0.0
        %1139 = vmatprep.subr.mxu0 0.0
        %1140 = vmatpush1.msra.mxu0 0.0
        %1141 = vmatprep.subr.mxu0 0.0
        %1142 = vmatpush1.msra.mxu0 0.0
        %1143 = vmatprep.subr.mxu0 0.0
        %1144 = vmatpush1.msra.mxu0 0.0
        %1145 = vmatprep.subr.mxu0 0.0
        %1146 = vmatpush1.msra.mxu0 0.0
        %1147 = vmatprep.subr.mxu0 0.0
        %1148 = vmatpush1.msra.mxu0 0.0
        %1149 = vmatprep.subr.mxu0 0.0
        %1150 = vmatpush1.msra.mxu0 0.0
        %1151 = vmatprep.subr.mxu0 0.0
        %1152 = vmatpush1.msra.mxu0 0.0
        %1153 = vmatprep.subr.mxu0 0.0
        %1154 = vmatpush1.msra.mxu0 0.0
        %1155 = vmatprep.subr.mxu0 0.0
        %1156 = vmatpush1.msra.mxu0 0.0
        %1157 = vmatprep.subr.mxu0 0.0
        %1158 = vmatpush1.msra.mxu0 0.0
        %1159 = vmatprep.subr.mxu0 0.0
        %1160 = vmatpush1.msra.mxu0 0.0
        %1161 = vmatprep.subr.mxu0 0.0
        %1162 = vmatpush1.msra.mxu0 0.0
        %1163 = vmatprep.subr.mxu0 0.0
        %1164 = vmatpush1.msra.mxu0 0.0
        %1165 = vmatprep.subr.mxu0 0.0
        %1166 = vmatpush1.msra.mxu0 0.0
        %1167 = vmatprep.subr.mxu0 0.0
        %1168 = vmatpush1.msra.mxu0 0.0
        %1169 = vmatprep.subr.mxu0 0.0
        %1170 = vmatpush1.msra.mxu0 0.0
        %1171 = vmatprep.mubr.f32.mxu0 0.0
        %1172 = vmatmul.mubr.f32.gmra.mrb[0].mxu0 %v329
        %v1173 = vpop.f32.mrb[0].mxu0
        %v1174 = vadd.f32 %v958, %v1173
        %v1175 = vpop.f32.mrb[0].mxu0
        %1176 = vdwg.mxu0
        %1177 = vmatprep.subr.mxu0 0.0
        %1178 = vmatpush1.msra.mxu0 %v623
        %1179 = vmatprep.subr.mxu0 0.0
        %1180 = vmatpush1.msra.mxu0 %v624
        %1181 = vmatprep.subr.mxu0 0.0
        %1182 = vmatpush1.msra.mxu0 %v625
        %1183 = vmatprep.subr.mxu0 0.0
        %1184 = vmatpush1.msra.mxu0 %v626
        %1185 = vmatprep.subr.mxu0 0.0
        %1186 = vmatpush1.msra.mxu0 0.0
        %1187 = vmatprep.subr.mxu0 0.0
        %1188 = vmatpush1.msra.mxu0 0.0
        %1189 = vmatprep.subr.mxu0 0.0
        %1190 = vmatpush1.msra.mxu0 0.0
        %1191 = vmatprep.subr.mxu0 0.0
        %1192 = vmatpush1.msra.mxu0 0.0
        %1193 = vmatprep.subr.mxu0 0.0
        %1194 = vmatpush1.msra.mxu0 0.0
        %1195 = vmatprep.subr.mxu0 0.0
        %1196 = vmatpush1.msra.mxu0 0.0
        %1197 = vmatprep.subr.mxu0 0.0
        %1198 = vmatpush1.msra.mxu0 0.0
        %1199 = vmatprep.subr.mxu0 0.0
        %1200 = vmatpush1.msra.mxu0 0.0
        %1201 = vmatprep.subr.mxu0 0.0
        %1202 = vmatpush1.msra.mxu0 0.0
        %1203 = vmatprep.subr.mxu0 0.0
        %1204 = vmatpush1.msra.mxu0 0.0
        %1205 = vmatprep.subr.mxu0 0.0
        %1206 = vmatpush1.msra.mxu0 0.0
        %1207 = vmatprep.subr.mxu0 0.0
        %1208 = vmatpush1.msra.mxu0 0.0
        %1209 = vmatprep.subr.mxu0 0.0
        %1210 = vmatpush1.msra.mxu0 0.0
        %1211 = vmatprep.subr.mxu0 0.0
        %1212 = vmatpush1.msra.mxu0 0.0
        %1213 = vmatprep.subr.mxu0 0.0
        %1214 = vmatpush1.msra.mxu0 0.0
        %1215 = vmatprep.subr.mxu0 0.0
        %1216 = vmatpush1.msra.mxu0 0.0
        %1217 = vmatprep.subr.mxu0 0.0
        %1218 = vmatpush1.msra.mxu0 0.0
        %1219 = vmatprep.subr.mxu0 0.0
        %1220 = vmatpush1.msra.mxu0 0.0
        %1221 = vmatprep.subr.mxu0 0.0
        %1222 = vmatpush1.msra.mxu0 0.0
        %1223 = vmatprep.subr.mxu0 0.0
        %1224 = vmatpush1.msra.mxu0 0.0
        %1225 = vmatprep.subr.mxu0 0.0
        %1226 = vmatpush1.msra.mxu0 0.0
        %1227 = vmatprep.subr.mxu0 0.0
        %1228 = vmatpush1.msra.mxu0 0.0
        %1229 = vmatprep.subr.mxu0 0.0
        %1230 = vmatpush1.msra.mxu0 0.0
        %1231 = vmatprep.subr.mxu0 0.0
        %1232 = vmatpush1.msra.mxu0 0.0
        %1233 = vmatprep.subr.mxu0 0.0
        %1234 = vmatpush1.msra.mxu0 0.0
        %1235 = vmatprep.subr.mxu0 0.0
        %1236 = vmatpush1.msra.mxu0 0.0
        %1237 = vmatprep.subr.mxu0 0.0
        %1238 = vmatpush1.msra.mxu0 0.0
        %1239 = vmatprep.subr.mxu0 0.0
        %1240 = vmatpush1.msra.mxu0 0.0
        %1241 = vmatprep.mubr.f32.mxu0 0.0
        %1242 = vmatmul.mubr.f32.gmra.mrb[0].mxu0 %v329
        %v1243 = vpop.f32.mrb[0].mxu0
        %v1244 = vadd.f32 %v962, %v1243
        %v1245 = vpop.f32.mrb[0].mxu0
        %1246 = vdwg.mxu0
        %v1247 = vld [vmem:[%s293] sm:$0xff]
        %v1248 = vld [vmem:[%s293 + $0x8] sm:$0xff]
        %v1249 = vld [vmem:[%s293 + $0x10] sm:$0xff]
        %v1250 = vld [vmem:[%s293 + $0x18] sm:$0xff]
        %vm1251 = vcmask 64512
        %v1253 = vsel %vm1251, %v935, 0
        %v1256 = vsel %vm1251, %v398, 0
        %1258 = vmatprep.subr.mxu0 0.0
        %1259 = vmatpush1.xpose.msra.mxu0 %v1256
        %1260 = vmatprep.subr.mxu0 0.0
        %1261 = vmatpush1.xpose.msra.mxu0 0.0
        %1262 = vmatprep.subr.mxu0 0.0
        %1263 = vmatpush1.xpose.msra.mxu0 0.0
        %1264 = vmatprep.subr.mxu0 0.0
        %1265 = vmatpush1.xpose.msra.mxu0 0.0
        %1266 = vmatprep.subr.mxu0 0.0
        %1267 = vmatpush1.xpose.msra.mxu0 0.0
        %1268 = vmatprep.subr.mxu0 0.0
        %1269 = vmatpush1.xpose.msra.mxu0 0.0
        %1270 = vmatprep.subr.mxu0 0.0
        %1271 = vmatpush1.xpose.msra.mxu0 0.0
        %1272 = vmatprep.subr.mxu0 0.0
        %1273 = vmatpush1.xpose.msra.mxu0 0.0
        %1274 = vmatprep.subr.mxu0 0.0
        %1275 = vmatpush1.xpose.msra.mxu0 0.0
        %1276 = vmatprep.subr.mxu0 0.0
        %1277 = vmatpush1.xpose.msra.mxu0 0.0
        %1278 = vmatprep.subr.mxu0 0.0
        %1279 = vmatpush1.xpose.msra.mxu0 0.0
        %1280 = vmatprep.subr.mxu0 0.0
        %1281 = vmatpush1.xpose.msra.mxu0 0.0
        %1282 = vmatprep.subr.mxu0 0.0
        %1283 = vmatpush1.xpose.msra.mxu0 0.0
        %1284 = vmatprep.subr.mxu0 0.0
        %1285 = vmatpush1.xpose.msra.mxu0 0.0
        %1286 = vmatprep.subr.mxu0 0.0
        %1287 = vmatpush1.xpose.msra.mxu0 0.0
        %1288 = vmatprep.subr.mxu0 0.0
        %1289 = vmatpush1.xpose.msra.mxu0 0.0
        %1290 = vmatprep.subr.mxu0 0.0
        %1291 = vmatpush1.xpose.msra.mxu0 0.0
        %1292 = vmatprep.subr.mxu0 0.0
        %1293 = vmatpush1.xpose.msra.mxu0 0.0
        %1294 = vmatprep.subr.mxu0 0.0
        %1295 = vmatpush1.xpose.msra.mxu0 0.0
        %1296 = vmatprep.subr.mxu0 0.0
        %1297 = vmatpush1.xpose.msra.mxu0 0.0
        %1298 = vmatprep.subr.mxu0 0.0
        %1299 = vmatpush1.xpose.msra.mxu0 0.0
        %1300 = vmatprep.subr.mxu0 0.0
        %1301 = vmatpush1.xpose.msra.mxu0 0.0
        %1302 = vmatprep.subr.mxu0 0.0
        %1303 = vmatpush1.xpose.msra.mxu0 0.0
        %1304 = vmatprep.subr.mxu0 0.0
        %1305 = vmatpush1.xpose.msra.mxu0 0.0
        %1306 = vmatprep.subr.mxu0 0.0
        %1307 = vmatpush1.xpose.msra.mxu0 0.0
        %1308 = vmatprep.subr.mxu0 0.0
        %1309 = vmatpush1.xpose.msra.mxu0 0.0
        %1310 = vmatprep.subr.mxu0 0.0
        %1311 = vmatpush1.xpose.msra.mxu0 0.0
        %1312 = vmatprep.subr.mxu0 0.0
        %1313 = vmatpush1.xpose.msra.mxu0 0.0
        %1314 = vmatprep.subr.mxu0 0.0
        %1315 = vmatpush1.xpose.msra.mxu0 0.0
        %1316 = vmatprep.subr.mxu0 0.0
        %1317 = vmatpush1.xpose.msra.mxu0 0.0
        %1318 = vmatprep.subr.mxu0 0.0
        %1319 = vmatpush1.xpose.msra.mxu0 0.0
        %1320 = vmatprep.subr.mxu0 0.0
        %1321 = vmatpush1.xpose.msra.mxu0 0.0
        %1322 = vmatprep.mubr.f32.mxu0 0.0
        %1323 = vmatmul.mubr.f32.gmra.mrb[0].mxu0 %v1253
        %v1324 = vpop.f32.mrb[0].mxu0
        %v1325 = vadd.f32 %v1247, %v1324
        %v1326 = vpop.f32.mrb[0].mxu0
        %1327 = vdwg.mxu0
        %v1329 = vsel %vm1251, %v936, 0
        %v1332 = vsel %vm1251, %v468, 0
        %1334 = vmatprep.subr.mxu0 0.0
        %1335 = vmatpush1.xpose.msra.mxu0 %v1332
        %1336 = vmatprep.subr.mxu0 0.0
        %1337 = vmatpush1.xpose.msra.mxu0 0.0
        %1338 = vmatprep.subr.mxu0 0.0
        %1339 = vmatpush1.xpose.msra.mxu0 0.0
        %1340 = vmatprep.subr.mxu0 0.0
        %1341 = vmatpush1.xpose.msra.mxu0 0.0
        %1342 = vmatprep.subr.mxu0 0.0
        %1343 = vmatpush1.xpose.msra.mxu0 0.0
        %1344 = vmatprep.subr.mxu0 0.0
        %1345 = vmatpush1.xpose.msra.mxu0 0.0
        %1346 = vmatprep.subr.mxu0 0.0
        %1347 = vmatpush1.xpose.msra.mxu0 0.0
        %1348 = vmatprep.subr.mxu0 0.0
        %1349 = vmatpush1.xpose.msra.mxu0 0.0
        %1350 = vmatprep.subr.mxu0 0.0
        %1351 = vmatpush1.xpose.msra.mxu0 0.0
        %1352 = vmatprep.subr.mxu0 0.0
        %1353 = vmatpush1.xpose.msra.mxu0 0.0
        %1354 = vmatprep.subr.mxu0 0.0
        %1355 = vmatpush1.xpose.msra.mxu0 0.0
        %1356 = vmatprep.subr.mxu0 0.0
        %1357 = vmatpush1.xpose.msra.mxu0 0.0
        %1358 = vmatprep.subr.mxu0 0.0
        %1359 = vmatpush1.xpose.msra.mxu0 0.0
        %1360 = vmatprep.subr.mxu0 0.0
        %1361 = vmatpush1.xpose.msra.mxu0 0.0
        %1362 = vmatprep.subr.mxu0 0.0
        %1363 = vmatpush1.xpose.msra.mxu0 0.0
        %1364 = vmatprep.subr.mxu0 0.0
        %1365 = vmatpush1.xpose.msra.mxu0 0.0
        %1366 = vmatprep.subr.mxu0 0.0
        %1367 = vmatpush1.xpose.msra.mxu0 0.0
        %1368 = vmatprep.subr.mxu0 0.0
        %1369 = vmatpush1.xpose.msra.mxu0 0.0
        %1370 = vmatprep.subr.mxu0 0.0
        %1371 = vmatpush1.xpose.msra.mxu0 0.0
        %1372 = vmatprep.subr.mxu0 0.0
        %1373 = vmatpush1.xpose.msra.mxu0 0.0
        %1374 = vmatprep.subr.mxu0 0.0
        %1375 = vmatpush1.xpose.msra.mxu0 0.0
        %1376 = vmatprep.subr.mxu0 0.0
        %1377 = vmatpush1.xpose.msra.mxu0 0.0
        %1378 = vmatprep.subr.mxu0 0.0
        %1379 = vmatpush1.xpose.msra.mxu0 0.0
        %1380 = vmatprep.subr.mxu0 0.0
        %1381 = vmatpush1.xpose.msra.mxu0 0.0
        %1382 = vmatprep.subr.mxu0 0.0
        %1383 = vmatpush1.xpose.msra.mxu0 0.0
        %1384 = vmatprep.subr.mxu0 0.0
        %1385 = vmatpush1.xpose.msra.mxu0 0.0
        %1386 = vmatprep.subr.mxu0 0.0
        %1387 = vmatpush1.xpose.msra.mxu0 0.0
        %1388 = vmatprep.subr.mxu0 0.0
        %1389 = vmatpush1.xpose.msra.mxu0 0.0
        %1390 = vmatprep.subr.mxu0 0.0
        %1391 = vmatpush1.xpose.msra.mxu0 0.0
        %1392 = vmatprep.subr.mxu0 0.0
        %1393 = vmatpush1.xpose.msra.mxu0 0.0
        %1394 = vmatprep.subr.mxu0 0.0
        %1395 = vmatpush1.xpose.msra.mxu0 0.0
        %1396 = vmatprep.subr.mxu0 0.0
        %1397 = vmatpush1.xpose.msra.mxu0 0.0
        %1398 = vmatprep.mubr.f32.mxu0 0.0
        %1399 = vmatmul.mubr.f32.gmra.mrb[0].mxu0 %v1329
        %v1400 = vpop.f32.mrb[0].mxu0
        %v1401 = vadd.f32 %v1248, %v1400
        %v1402 = vpop.f32.mrb[0].mxu0
        %1403 = vdwg.mxu0
        %v1405 = vsel %vm1251, %v937, 0
        %v1408 = vsel %vm1251, %v538, 0
        %1410 = vmatprep.subr.mxu0 0.0
        %1411 = vmatpush1.xpose.msra.mxu0 %v1408
        %1412 = vmatprep.subr.mxu0 0.0
        %1413 = vmatpush1.xpose.msra.mxu0 0.0
        %1414 = vmatprep.subr.mxu0 0.0
        %1415 = vmatpush1.xpose.msra.mxu0 0.0
        %1416 = vmatprep.subr.mxu0 0.0
        %1417 = vmatpush1.xpose.msra.mxu0 0.0
        %1418 = vmatprep.subr.mxu0 0.0
        %1419 = vmatpush1.xpose.msra.mxu0 0.0
        %1420 = vmatprep.subr.mxu0 0.0
        %1421 = vmatpush1.xpose.msra.mxu0 0.0
        %1422 = vmatprep.subr.mxu0 0.0
        %1423 = vmatpush1.xpose.msra.mxu0 0.0
        %1424 = vmatprep.subr.mxu0 0.0
        %1425 = vmatpush1.xpose.msra.mxu0 0.0
        %1426 = vmatprep.subr.mxu0 0.0
        %1427 = vmatpush1.xpose.msra.mxu0 0.0
        %1428 = vmatprep.subr.mxu0 0.0
        %1429 = vmatpush1.xpose.msra.mxu0 0.0
        %1430 = vmatprep.subr.mxu0 0.0
        %1431 = vmatpush1.xpose.msra.mxu0 0.0
        %1432 = vmatprep.subr.mxu0 0.0
        %1433 = vmatpush1.xpose.msra.mxu0 0.0
        %1434 = vmatprep.subr.mxu0 0.0
        %1435 = vmatpush1.xpose.msra.mxu0 0.0
        %1436 = vmatprep.subr.mxu0 0.0
        %1437 = vmatpush1.xpose.msra.mxu0 0.0
        %1438 = vmatprep.subr.mxu0 0.0
        %1439 = vmatpush1.xpose.msra.mxu0 0.0
        %1440 = vmatprep.subr.mxu0 0.0
        %1441 = vmatpush1.xpose.msra.mxu0 0.0
        %1442 = vmatprep.subr.mxu0 0.0
        %1443 = vmatpush1.xpose.msra.mxu0 0.0
        %1444 = vmatprep.subr.mxu0 0.0
        %1445 = vmatpush1.xpose.msra.mxu0 0.0
        %1446 = vmatprep.subr.mxu0 0.0
        %1447 = vmatpush1.xpose.msra.mxu0 0.0
        %1448 = vmatprep.subr.mxu0 0.0
        %1449 = vmatpush1.xpose.msra.mxu0 0.0
        %1450 = vmatprep.subr.mxu0 0.0
        %1451 = vmatpush1.xpose.msra.mxu0 0.0
        %1452 = vmatprep.subr.mxu0 0.0
        %1453 = vmatpush1.xpose.msra.mxu0 0.0
        %1454 = vmatprep.subr.mxu0 0.0
        %1455 = vmatpush1.xpose.msra.mxu0 0.0
        %1456 = vmatprep.subr.mxu0 0.0
        %1457 = vmatpush1.xpose.msra.mxu0 0.0
        %1458 = vmatprep.subr.mxu0 0.0
        %1459 = vmatpush1.xpose.msra.mxu0 0.0
        %1460 = vmatprep.subr.mxu0 0.0
        %1461 = vmatpush1.xpose.msra.mxu0 0.0
        %1462 = vmatprep.subr.mxu0 0.0
        %1463 = vmatpush1.xpose.msra.mxu0 0.0
        %1464 = vmatprep.subr.mxu0 0.0
        %1465 = vmatpush1.xpose.msra.mxu0 0.0
        %1466 = vmatprep.subr.mxu0 0.0
        %1467 = vmatpush1.xpose.msra.mxu0 0.0
        %1468 = vmatprep.subr.mxu0 0.0
        %1469 = vmatpush1.xpose.msra.mxu0 0.0
        %1470 = vmatprep.subr.mxu0 0.0
        %1471 = vmatpush1.xpose.msra.mxu0 0.0
        %1472 = vmatprep.subr.mxu0 0.0
        %1473 = vmatpush1.xpose.msra.mxu0 0.0
        %1474 = vmatprep.mubr.f32.mxu0 0.0
        %1475 = vmatmul.mubr.f32.gmra.mrb[0].mxu0 %v1405
        %v1476 = vpop.f32.mrb[0].mxu0
        %v1477 = vadd.f32 %v1249, %v1476
        %v1478 = vpop.f32.mrb[0].mxu0
        %1479 = vdwg.mxu0
        %v1481 = vsel %vm1251, %v938, 0
        %v1484 = vsel %vm1251, %v608, 0
        %1486 = vmatprep.subr.mxu0 0.0
        %1487 = vmatpush1.xpose.msra.mxu0 %v1484
        %1488 = vmatprep.subr.mxu0 0.0
        %1489 = vmatpush1.xpose.msra.mxu0 0.0
        %1490 = vmatprep.subr.mxu0 0.0
        %1491 = vmatpush1.xpose.msra.mxu0 0.0
        %1492 = vmatprep.subr.mxu0 0.0
        %1493 = vmatpush1.xpose.msra.mxu0 0.0
        %1494 = vmatprep.subr.mxu0 0.0
        %1495 = vmatpush1.xpose.msra.mxu0 0.0
        %1496 = vmatprep.subr.mxu0 0.0
        %1497 = vmatpush1.xpose.msra.mxu0 0.0
        %1498 = vmatprep.subr.mxu0 0.0
        %1499 = vmatpush1.xpose.msra.mxu0 0.0
        %1500 = vmatprep.subr.mxu0 0.0
        %1501 = vmatpush1.xpose.msra.mxu0 0.0
        %1502 = vmatprep.subr.mxu0 0.0
        %1503 = vmatpush1.xpose.msra.mxu0 0.0
        %1504 = vmatprep.subr.mxu0 0.0
        %1505 = vmatpush1.xpose.msra.mxu0 0.0
        %1506 = vmatprep.subr.mxu0 0.0
        %1507 = vmatpush1.xpose.msra.mxu0 0.0
        %1508 = vmatprep.subr.mxu0 0.0
        %1509 = vmatpush1.xpose.msra.mxu0 0.0
        %1510 = vmatprep.subr.mxu0 0.0
        %1511 = vmatpush1.xpose.msra.mxu0 0.0
        %1512 = vmatprep.subr.mxu0 0.0
        %1513 = vmatpush1.xpose.msra.mxu0 0.0
        %1514 = vmatprep.subr.mxu0 0.0
        %1515 = vmatpush1.xpose.msra.mxu0 0.0
        %1516 = vmatprep.subr.mxu0 0.0
        %1517 = vmatpush1.xpose.msra.mxu0 0.0
        %1518 = vmatprep.subr.mxu0 0.0
        %1519 = vmatpush1.xpose.msra.mxu0 0.0
        %1520 = vmatprep.subr.mxu0 0.0
        %1521 = vmatpush1.xpose.msra.mxu0 0.0
        %1522 = vmatprep.subr.mxu0 0.0
        %1523 = vmatpush1.xpose.msra.mxu0 0.0
        %1524 = vmatprep.subr.mxu0 0.0
        %1525 = vmatpush1.xpose.msra.mxu0 0.0
        %1526 = vmatprep.subr.mxu0 0.0
        %1527 = vmatpush1.xpose.msra.mxu0 0.0
        %1528 = vmatprep.subr.mxu0 0.0
        %1529 = vmatpush1.xpose.msra.mxu0 0.0
        %1530 = vmatprep.subr.mxu0 0.0
        %1531 = vmatpush1.xpose.msra.mxu0 0.0
        %1532 = vmatprep.subr.mxu0 0.0
        %1533 = vmatpush1.xpose.msra.mxu0 0.0
        %1534 = vmatprep.subr.mxu0 0.0
        %1535 = vmatpush1.xpose.msra.mxu0 0.0
        %1536 = vmatprep.subr.mxu0 0.0
        %1537 = vmatpush1.xpose.msra.mxu0 0.0
        %1538 = vmatprep.subr.mxu0 0.0
        %1539 = vmatpush1.xpose.msra.mxu0 0.0
        %1540 = vmatprep.subr.mxu0 0.0
        %1541 = vmatpush1.xpose.msra.mxu0 0.0
        %1542 = vmatprep.subr.mxu0 0.0
        %1543 = vmatpush1.xpose.msra.mxu0 0.0
        %1544 = vmatprep.subr.mxu0 0.0
        %1545 = vmatpush1.xpose.msra.mxu0 0.0
        %1546 = vmatprep.subr.mxu0 0.0
        %1547 = vmatpush1.xpose.msra.mxu0 0.0
        %1548 = vmatprep.subr.mxu0 0.0
        %1549 = vmatpush1.xpose.msra.mxu0 0.0
        %1550 = vmatprep.mubr.f32.mxu0 0.0
        %1551 = vmatmul.mubr.f32.gmra.mrb[0].mxu0 %v1481
        %v1552 = vpop.f32.mrb[0].mxu0
        %v1553 = vadd.f32 %v1250, %v1552
        %v1554 = vpop.f32.mrb[0].mxu0
        %1555 = vdwg.mxu0
        %v1556 = vsel %vm1251, %v1325, -inf
        %1557 = vmax.xlane.f32.xlu0 %v1556
        %v1558 = vpop.xlane.xlu0 %1557
        %v1559 = vsel %vm1251, %v1401, -inf
        %1560 = vmax.xlane.f32.xlu0 %v1559
        %v1561 = vpop.xlane.xlu0 %1560
        %v1562 = vsel %vm1251, %v1477, -inf
        %1563 = vmax.xlane.f32.xlu0 %v1562
        %v1564 = vpop.xlane.xlu0 %1563
        %v1565 = vsel %vm1251, %v1553, -inf
        %1566 = vmax.xlane.f32.xlu0 %v1565
        %v1567 = vpop.xlane.xlu0 %1566
        %v1568 = vsub.f32 %v1325, %v1558
        %v1569 = vsub.f32 %v1401, %v1561
        %v1570 = vsub.f32 %v1477, %v1564
        %v1571 = vsub.f32 %v1553, %v1567
        %v1572 = vmul.f32 %v1568, 1.442695
        %v1573 = vpow.pop %v1572
        %v1574 = vmul.f32 %v1569, 1.442695
        %v1575 = vpow.pop %v1574
        %v1576 = vmul.f32 %v1570, 1.442695
        %v1577 = vpow.pop %v1576
        %v1578 = vmul.f32 %v1571, 1.442695
        %v1579 = vpow.pop %v1578
        %v1580 = vsel %vm1251, %v1573, 0.0
        %1581 = vadd.xlane.f32.xlu0 %v1580
        %v1582 = vpop.xlane.xlu0 %1581
        %v1583 = vsel %vm1251, %v1575, 0.0
        %1584 = vadd.xlane.f32.xlu0 %v1583
        %v1585 = vpop.xlane.xlu0 %1584
        %v1586 = vsel %vm1251, %v1577, 0.0
        %1587 = vadd.xlane.f32.xlu0 %v1586
        %v1588 = vpop.xlane.xlu0 %1587
        %v1589 = vsel %vm1251, %v1579, 0.0
        %1590 = vadd.xlane.f32.xlu0 %v1589
        %v1591 = vpop.xlane.xlu0 %1590
        %v1592 = vrcp.pop %v1582
        %v1593 = vrcp.pop %v1585
        %v1594 = vrcp.pop %v1588
        %v1595 = vrcp.pop %v1591
        %v1596 = vmul.f32 %v1573, %v1592
        %v1597 = vmul.f32 %v1575, %v1593
        %v1598 = vmul.f32 %v1577, %v1594
        %v1599 = vmul.f32 %v1579, %v1595
        %v1601 = vsel %vm1251, %v1596, 0
        %1603 = vmatprep.subr.mxu0 0.0
        %1604 = vmatpush1.msra.mxu0 %v1034
        %1605 = vmatprep.subr.mxu0 0.0
        %1606 = vmatpush1.msra.mxu0 0.0
        %1607 = vmatprep.subr.mxu0 0.0
        %1608 = vmatpush1.msra.mxu0 0.0
        %1609 = vmatprep.subr.mxu0 0.0
        %1610 = vmatpush1.msra.mxu0 0.0
        %1611 = vmatprep.subr.mxu0 0.0
        %1612 = vmatpush1.msra.mxu0 0.0
        %1613 = vmatprep.subr.mxu0 0.0
        %1614 = vmatpush1.msra.mxu0 0.0
        %1615 = vmatprep.subr.mxu0 0.0
        %1616 = vmatpush1.msra.mxu0 0.0
        %1617 = vmatprep.subr.mxu0 0.0
        %1618 = vmatpush1.msra.mxu0 0.0
        %1619 = vmatprep.subr.mxu0 0.0
        %1620 = vmatpush1.msra.mxu0 0.0
        %1621 = vmatprep.subr.mxu0 0.0
        %1622 = vmatpush1.msra.mxu0 0.0
        %1623 = vmatprep.subr.mxu0 0.0
        %1624 = vmatpush1.msra.mxu0 0.0
        %1625 = vmatprep.subr.mxu0 0.0
        %1626 = vmatpush1.msra.mxu0 0.0
        %1627 = vmatprep.subr.mxu0 0.0
        %1628 = vmatpush1.msra.mxu0 0.0
        %1629 = vmatprep.subr.mxu0 0.0
        %1630 = vmatpush1.msra.mxu0 0.0
        %1631 = vmatprep.subr.mxu0 0.0
        %1632 = vmatpush1.msra.mxu0 0.0
        %1633 = vmatprep.subr.mxu0 0.0
        %1634 = vmatpush1.msra.mxu0 0.0
        %1635 = vmatprep.subr.mxu0 0.0
        %1636 = vmatpush1.msra.mxu0 0.0
        %1637 = vmatprep.subr.mxu0 0.0
        %1638 = vmatpush1.msra.mxu0 0.0
        %1639 = vmatprep.subr.mxu0 0.0
        %1640 = vmatpush1.msra.mxu0 0.0
        %1641 = vmatprep.subr.mxu0 0.0
        %1642 = vmatpush1.msra.mxu0 0.0
        %1643 = vmatprep.subr.mxu0 0.0
        %1644 = vmatpush1.msra.mxu0 0.0
        %1645 = vmatprep.subr.mxu0 0.0
        %1646 = vmatpush1.msra.mxu0 0.0
        %1647 = vmatprep.subr.mxu0 0.0
        %1648 = vmatpush1.msra.mxu0 0.0
        %1649 = vmatprep.subr.mxu0 0.0
        %1650 = vmatpush1.msra.mxu0 0.0
        %1651 = vmatprep.subr.mxu0 0.0
        %1652 = vmatpush1.msra.mxu0 0.0
        %1653 = vmatprep.subr.mxu0 0.0
        %1654 = vmatpush1.msra.mxu0 0.0
        %1655 = vmatprep.subr.mxu0 0.0
        %1656 = vmatpush1.msra.mxu0 0.0
        %1657 = vmatprep.subr.mxu0 0.0
        %1658 = vmatpush1.msra.mxu0 0.0
        %1659 = vmatprep.subr.mxu0 0.0
        %1660 = vmatpush1.msra.mxu0 0.0
        %1661 = vmatprep.subr.mxu0 0.0
        %1662 = vmatpush1.msra.mxu0 0.0
        %1663 = vmatprep.subr.mxu0 0.0
        %1664 = vmatpush1.msra.mxu0 0.0
        %1665 = vmatprep.subr.mxu0 0.0
        %1666 = vmatpush1.msra.mxu0 0.0
        %1667 = vmatprep.mubr.f32.mxu0 0.0
        %1668 = vmatmul.mubr.f32.gmra.mrb[0].mxu0 %v1601
        %v1669 = vpop.f32.mrb[0].mxu0
        %v1670 = vadd.f32 0.0, %v1669
        %v1671 = vpop.f32.mrb[0].mxu0
        %1672 = vdwg.mxu0
        %v1674 = vsel %vm1251, %v1597, 0
        %1676 = vmatprep.subr.mxu0 0.0
        %1677 = vmatpush1.msra.mxu0 %v1104
        %1678 = vmatprep.subr.mxu0 0.0
        %1679 = vmatpush1.msra.mxu0 0.0
        %1680 = vmatprep.subr.mxu0 0.0
        %1681 = vmatpush1.msra.mxu0 0.0
        %1682 = vmatprep.subr.mxu0 0.0
        %1683 = vmatpush1.msra.mxu0 0.0
        %1684 = vmatprep.subr.mxu0 0.0
        %1685 = vmatpush1.msra.mxu0 0.0
        %1686 = vmatprep.subr.mxu0 0.0
        %1687 = vmatpush1.msra.mxu0 0.0
        %1688 = vmatprep.subr.mxu0 0.0
        %1689 = vmatpush1.msra.mxu0 0.0
        %1690 = vmatprep.subr.mxu0 0.0
        %1691 = vmatpush1.msra.mxu0 0.0
        %1692 = vmatprep.subr.mxu0 0.0
        %1693 = vmatpush1.msra.mxu0 0.0
        %1694 = vmatprep.subr.mxu0 0.0
        %1695 = vmatpush1.msra.mxu0 0.0
        %1696 = vmatprep.subr.mxu0 0.0
        %1697 = vmatpush1.msra.mxu0 0.0
        %1698 = vmatprep.subr.mxu0 0.0
        %1699 = vmatpush1.msra.mxu0 0.0
        %1700 = vmatprep.subr.mxu0 0.0
        %1701 = vmatpush1.msra.mxu0 0.0
        %1702 = vmatprep.subr.mxu0 0.0
        %1703 = vmatpush1.msra.mxu0 0.0
        %1704 = vmatprep.subr.mxu0 0.0
        %1705 = vmatpush1.msra.mxu0 0.0
        %1706 = vmatprep.subr.mxu0 0.0
        %1707 = vmatpush1.msra.mxu0 0.0
        %1708 = vmatprep.subr.mxu0 0.0
        %1709 = vmatpush1.msra.mxu0 0.0
        %1710 = vmatprep.subr.mxu0 0.0
        %1711 = vmatpush1.msra.mxu0 0.0
        %1712 = vmatprep.subr.mxu0 0.0
        %1713 = vmatpush1.msra.mxu0 0.0
        %1714 = vmatprep.subr.mxu0 0.0
        %1715 = vmatpush1.msra.mxu0 0.0
        %1716 = vmatprep.subr.mxu0 0.0
        %1717 = vmatpush1.msra.mxu0 0.0
        %1718 = vmatprep.subr.mxu0 0.0
        %1719 = vmatpush1.msra.mxu0 0.0
        %1720 = vmatprep.subr.mxu0 0.0
        %1721 = vmatpush1.msra.mxu0 0.0
        %1722 = vmatprep.subr.mxu0 0.0
        %1723 = vmatpush1.msra.mxu0 0.0
        %1724 = vmatprep.subr.mxu0 0.0
        %1725 = vmatpush1.msra.mxu0 0.0
        %1726 = vmatprep.subr.mxu0 0.0
        %1727 = vmatpush1.msra.mxu0 0.0
        %1728 = vmatprep.subr.mxu0 0.0
        %1729 = vmatpush1.msra.mxu0 0.0
        %1730 = vmatprep.subr.mxu0 0.0
        %1731 = vmatpush1.msra.mxu0 0.0
        %1732 = vmatprep.subr.mxu0 0.0
        %1733 = vmatpush1.msra.mxu0 0.0
        %1734 = vmatprep.subr.mxu0 0.0
        %1735 = vmatpush1.msra.mxu0 0.0
        %1736 = vmatprep.subr.mxu0 0.0
        %1737 = vmatpush1.msra.mxu0 0.0
        %1738 = vmatprep.subr.mxu0 0.0
        %1739 = vmatpush1.msra.mxu0 0.0
        %1740 = vmatprep.mubr.f32.mxu0 0.0
        %1741 = vmatmul.mubr.f32.gmra.mrb[0].mxu0 %v1674
        %v1742 = vpop.f32.mrb[0].mxu0
        %v1743 = vadd.f32 0.0, %v1742
        %v1744 = vpop.f32.mrb[0].mxu0
        %1745 = vdwg.mxu0
        %v1747 = vsel %vm1251, %v1598, 0
        %1749 = vmatprep.subr.mxu0 0.0
        %1750 = vmatpush1.msra.mxu0 %v1174
        %1751 = vmatprep.subr.mxu0 0.0
        %1752 = vmatpush1.msra.mxu0 0.0
        %1753 = vmatprep.subr.mxu0 0.0
        %1754 = vmatpush1.msra.mxu0 0.0
        %1755 = vmatprep.subr.mxu0 0.0
        %1756 = vmatpush1.msra.mxu0 0.0
        %1757 = vmatprep.subr.mxu0 0.0
        %1758 = vmatpush1.msra.mxu0 0.0
        %1759 = vmatprep.subr.mxu0 0.0
        %1760 = vmatpush1.msra.mxu0 0.0
        %1761 = vmatprep.subr.mxu0 0.0
        %1762 = vmatpush1.msra.mxu0 0.0
        %1763 = vmatprep.subr.mxu0 0.0
        %1764 = vmatpush1.msra.mxu0 0.0
        %1765 = vmatprep.subr.mxu0 0.0
        %1766 = vmatpush1.msra.mxu0 0.0
        %1767 = vmatprep.subr.mxu0 0.0
        %1768 = vmatpush1.msra.mxu0 0.0
        %1769 = vmatprep.subr.mxu0 0.0
        %1770 = vmatpush1.msra.mxu0 0.0
        %1771 = vmatprep.subr.mxu0 0.0
        %1772 = vmatpush1.msra.mxu0 0.0
        %1773 = vmatprep.subr.mxu0 0.0
        %1774 = vmatpush1.msra.mxu0 0.0
        %1775 = vmatprep.subr.mxu0 0.0
        %1776 = vmatpush1.msra.mxu0 0.0
        %1777 = vmatprep.subr.mxu0 0.0
        %1778 = vmatpush1.msra.mxu0 0.0
        %1779 = vmatprep.subr.mxu0 0.0
        %1780 = vmatpush1.msra.mxu0 0.0
        %1781 = vmatprep.subr.mxu0 0.0
        %1782 = vmatpush1.msra.mxu0 0.0
        %1783 = vmatprep.subr.mxu0 0.0
        %1784 = vmatpush1.msra.mxu0 0.0
        %1785 = vmatprep.subr.mxu0 0.0
        %1786 = vmatpush1.msra.mxu0 0.0
        %1787 = vmatprep.subr.mxu0 0.0
        %1788 = vmatpush1.msra.mxu0 0.0
        %1789 = vmatprep.subr.mxu0 0.0
        %1790 = vmatpush1.msra.mxu0 0.0
        %1791 = vmatprep.subr.mxu0 0.0
        %1792 = vmatpush1.msra.mxu0 0.0
        %1793 = vmatprep.subr.mxu0 0.0
        %1794 = vmatpush1.msra.mxu0 0.0
        %1795 = vmatprep.subr.mxu0 0.0
        %1796 = vmatpush1.msra.mxu0 0.0
        %1797 = vmatprep.subr.mxu0 0.0
        %1798 = vmatpush1.msra.mxu0 0.0
        %1799 = vmatprep.subr.mxu0 0.0
        %1800 = vmatpush1.msra.mxu0 0.0
        %1801 = vmatprep.subr.mxu0 0.0
        %1802 = vmatpush1.msra.mxu0 0.0
        %1803 = vmatprep.subr.mxu0 0.0
        %1804 = vmatpush1.msra.mxu0 0.0
        %1805 = vmatprep.subr.mxu0 0.0
        %1806 = vmatpush1.msra.mxu0 0.0
        %1807 = vmatprep.subr.mxu0 0.0
        %1808 = vmatpush1.msra.mxu0 0.0
        %1809 = vmatprep.subr.mxu0 0.0
        %1810 = vmatpush1.msra.mxu0 0.0
        %1811 = vmatprep.subr.mxu0 0.0
        %1812 = vmatpush1.msra.mxu0 0.0
        %1813 = vmatprep.mubr.f32.mxu0 0.0
        %1814 = vmatmul.mubr.f32.gmra.mrb[0].mxu0 %v1747
        %v1815 = vpop.f32.mrb[0].mxu0
        %v1816 = vadd.f32 0.0, %v1815
        %v1817 = vpop.f32.mrb[0].mxu0
        %1818 = vdwg.mxu0
        %v1820 = vsel %vm1251, %v1599, 0
        %1822 = vmatprep.subr.mxu0 0.0
        %1823 = vmatpush1.msra.mxu0 %v1244
        %1824 = vmatprep.subr.mxu0 0.0
        %1825 = vmatpush1.msra.mxu0 0.0
        %1826 = vmatprep.subr.mxu0 0.0
        %1827 = vmatpush1.msra.mxu0 0.0
        %1828 = vmatprep.subr.mxu0 0.0
        %1829 = vmatpush1.msra.mxu0 0.0
        %1830 = vmatprep.subr.mxu0 0.0
        %1831 = vmatpush1.msra.mxu0 0.0
        %1832 = vmatprep.subr.mxu0 0.0
        %1833 = vmatpush1.msra.mxu0 0.0
        %1834 = vmatprep.subr.mxu0 0.0
        %1835 = vmatpush1.msra.mxu0 0.0
        %1836 = vmatprep.subr.mxu0 0.0
        %1837 = vmatpush1.msra.mxu0 0.0
        %1838 = vmatprep.subr.mxu0 0.0
        %1839 = vmatpush1.msra.mxu0 0.0
        %1840 = vmatprep.subr.mxu0 0.0
        %1841 = vmatpush1.msra.mxu0 0.0
        %1842 = vmatprep.subr.mxu0 0.0
        %1843 = vmatpush1.msra.mxu0 0.0
        %1844 = vmatprep.subr.mxu0 0.0
        %1845 = vmatpush1.msra.mxu0 0.0
        %1846 = vmatprep.subr.mxu0 0.0
        %1847 = vmatpush1.msra.mxu0 0.0
        %1848 = vmatprep.subr.mxu0 0.0
        %1849 = vmatpush1.msra.mxu0 0.0
        %1850 = vmatprep.subr.mxu0 0.0
        %1851 = vmatpush1.msra.mxu0 0.0
        %1852 = vmatprep.subr.mxu0 0.0
        %1853 = vmatpush1.msra.mxu0 0.0
        %1854 = vmatprep.subr.mxu0 0.0
        %1855 = vmatpush1.msra.mxu0 0.0
        %1856 = vmatprep.subr.mxu0 0.0
        %1857 = vmatpush1.msra.mxu0 0.0
        %1858 = vmatprep.subr.mxu0 0.0
        %1859 = vmatpush1.msra.mxu0 0.0
        %1860 = vmatprep.subr.mxu0 0.0
        %1861 = vmatpush1.msra.mxu0 0.0
        %1862 = vmatprep.subr.mxu0 0.0
        %1863 = vmatpush1.msra.mxu0 0.0
        %1864 = vmatprep.subr.mxu0 0.0
        %1865 = vmatpush1.msra.mxu0 0.0
        %1866 = vmatprep.subr.mxu0 0.0
        %1867 = vmatpush1.msra.mxu0 0.0
        %1868 = vmatprep.subr.mxu0 0.0
        %1869 = vmatpush1.msra.mxu0 0.0
        %1870 = vmatprep.subr.mxu0 0.0
        %1871 = vmatpush1.msra.mxu0 0.0
        %1872 = vmatprep.subr.mxu0 0.0
        %1873 = vmatpush1.msra.mxu0 0.0
        %1874 = vmatprep.subr.mxu0 0.0
        %1875 = vmatpush1.msra.mxu0 0.0
        %1876 = vmatprep.subr.mxu0 0.0
        %1877 = vmatpush1.msra.mxu0 0.0
        %1878 = vmatprep.subr.mxu0 0.0
        %1879 = vmatpush1.msra.mxu0 0.0
        %1880 = vmatprep.subr.mxu0 0.0
        %1881 = vmatpush1.msra.mxu0 0.0
        %1882 = vmatprep.subr.mxu0 0.0
        %1883 = vmatpush1.msra.mxu0 0.0
        %1884 = vmatprep.subr.mxu0 0.0
        %1885 = vmatpush1.msra.mxu0 0.0
        %1886 = vmatprep.mubr.f32.mxu0 0.0
        %1887 = vmatmul.mubr.f32.gmra.mrb[0].mxu0 %v1820
        %v1888 = vpop.f32.mrb[0].mxu0
        %v1889 = vadd.f32 0.0, %v1888
        %v1890 = vpop.f32.mrb[0].mxu0
        %1891 = vdwg.mxu0
        %1893 = vrot.lane.b32.xlu0 %v1743, 8
        %v1894 = vpop.permute.xlu0 %1893
        %1897 = vrot.lane.b32.xlu0 %v1816, 16
        %v1898 = vpop.permute.xlu0 %1897
        %1901 = vrot.lane.b32.xlu0 %v1889, 24
        %v1902 = vpop.permute.xlu0 %1901
        %v1904 = vsel %vm1251, %v1670, %v1894
        %vm1905 = vcmask 130048
        %v1906 = vsel %vm1905, %v1904, %v1898
        %vm1907 = vcmask 195584
        %v1908 = vsel %vm1907, %v1906, %v1902
        %1909 = vst.msk [vmem:[%s284] sm:$0xff] %vm327, %v1908
        %s1910 = sand.u32 %s186, 1
        %s1911 = scalar_lea.sflag [#allocation3], %s1910
        %s1912 = sand.u32 %s186, 1
        %s1913 = smul.addr %s1912, 8
        %s1914 = scalar_lea.vmem [#allocation2], %s1913
        // Predicated region
        $region49: #{tpu_custom_call.1} parent=47 // pred_check
          %p1915 = pneg %p196
        $region50: #{tpu_custom_call.1} parent=47 // pred_check_branch
          %1917 = sbr.rel (%p1915) target = $region52
        $region51: #{tpu_custom_call.1} parent=47 // pred_region
          %s1919 = ssub.s32 128, 128
          %1920 = vsyncadd %s1911, %s1919
          %s1921 = smul.addr %s21, 128
          %s1922 = scalar_lea.hbm %s7, %s1921
          %s1924 = sshll.u32 %s1914, 4
          %s1925 = int_to_ptr.vmem [resolvable:$true] %s1924
          %1927 = dma.vmem_to_hbm [thread:$0]  %s1925, 128, %s1922, %s1911
        $region52: #{tpu_custom_call.1} parent=47 // pred_fallthru
          _
      $region48: #{tpu_custom_call.1} parent=5 // pred_fallthru
        _
      %p1928 = scmp.le.s32.totalorder 2, %s16
      // Predicated region
      $region53: #{tpu_custom_call.1} parent=5 // pred_check
        %p1929 = pneg %p1928
      $region54: #{tpu_custom_call.1} parent=5 // pred_check_branch
        %1931 = sbr.rel (%p1929) target = $region56
      $region55: #{tpu_custom_call.1} parent=5 // pred_region
        %s1932 = ssub.s32 %s16, 2
        // Predicated region
        $region57: #{tpu_custom_call.1} parent=55 // pred_check
          %p1933 = pneg %p202
        $region58: #{tpu_custom_call.1} parent=55 // pred_check_branch
          %1935 = sbr.rel (%p1933) target = $region60
        $region59: #{tpu_custom_call.1} parent=55 // pred_region
          %s1936 = sand.u32 %s187, 1
          %s1937 = scalar_lea.sflag [#allocation3], %s1936
          %s1938 = sand.u32 %s187, 1
          %s1939 = smul.addr %s1938, 8
          %s1940 = scalar_lea.vmem [#allocation2], %s1939
          %1941 = dma.done %s1937, 128
        $region60: #{tpu_custom_call.1} parent=55 // pred_fallthru
          _
      $region56: #{tpu_custom_call.1} parent=5 // pred_fallthru
        _
    $region6: #{tpu_custom_call.1} parent=1 // loop_footer
      %s20 = sadd.s32 1, %s16
    $region7: #{tpu_custom_call.1} parent=1 // loop_footer_branch
      %15 = sbr.rel target = $region3
    $region8: #{tpu_custom_call.1} parent=1 // loop_exit
      _
    %1942 = vsyncpa [#allocation3], 1
    %s1943 = scalar_lea.sflag [#allocation3], 1
    %1944 = vsyncpa %s1943, 1

</llo_original>
